<compile_context>
chip_gen: v7x
topology: tpu7x:2x2x1
jax: 0.10.0
libtpu: 0.0.40
codegen_flags: <defaults>
</compile_context>

<pallas_src>
import functools

import jax
import jax.numpy as jnp
from jax.experimental import pallas as pl
from jax.experimental.pallas import tpu as pltpu


def dan_kernel(x_ref, mask_ref, w_ref, b_ref, combined_ref, layers_ref,
               sum_sc, len_sc, *, num_layers):
    t = pl.program_id(1)

    @pl.when(t == 0)
    def _():
        sum_sc[...] = jnp.zeros_like(sum_sc)
        len_sc[...] = jnp.zeros_like(len_sc)

    x = x_ref[...]                                   # (tb, tt, D), input dtype
    m = mask_ref[...]                                # (tb, tt), f32

    # Masked token sum + token count, accumulated in f32 scratch across t-tiles.
    # Multiply in the input dtype (no full f32 copy of the x tile); the convert
    # happens only on the way into the f32 reduction.
    prod = x * m[:, :, None].astype(x.dtype)
    sum_sc[...] += jnp.sum(prod.astype(jnp.float32), axis=1)      # (tb, D)
    len_sc[...] += jnp.sum(m, axis=1, keepdims=True)              # (tb, 1)

    @pl.when(t == pl.num_programs(1) - 1)
    def _():
        # NOTE: division by zero for all-padding rows matches PyTorch semantics.
        avg = sum_sc[...] / len_sc[...]
        # Shared linear layer (weight pre-transposed): y = avg @ W^T + b,
        # f32 accumulation on the MXU.
        y = jnp.dot(avg.astype(w_ref.dtype), w_ref[...],
                    preferred_element_type=jnp.float32) + b_ref[...].astype(jnp.float32)
        relu_y = jnp.maximum(y, 0.0)
        combined_ref[...] = y.astype(combined_ref.dtype)

        # layer_representations: (num_layers-1) copies of relu(y) followed by y.
        # Two direct slab stores; no iota/select materialization.
        tb, d = y.shape
        if num_layers > 1:
            layers_ref[:, : num_layers - 1, :] = jnp.broadcast_to(
                relu_y.astype(layers_ref.dtype)[:, None, :],
                (tb, num_layers - 1, d))
        layers_ref[:, num_layers - 1:, :] = y.astype(layers_ref.dtype)[:, None, :]


def _round_up(x, m):
    return -(-x // m) * m


def _vmem_limit_bytes():
    """Generation-aware scoped-VMEM budget, conservative for unknown chips.

    v4/v5e/v5p/v6e have 128 MiB VMEM per TensorCore -> 80 MiB scoped budget.
    v7x has only 64 MiB per TC (and unknown chips are treated the same) ->
    44 MiB so the kernel can never request more VMEM than physically exists.
    """
    try:
        kind = jax.devices()[0].device_kind.lower()
    except Exception:  # pragma: no cover - defensive
        kind = ""
    big_vmem = any(tag in kind for tag in ("v4", "v5", "v6"))
    return (80 if big_vmem else 44) * 1024 * 1024


def _choose_tiles(B, T, D, block_elems):
    """Pick (tb, tt) with tb % 8 == 0, tt % 128 == 0 and tb*tt*D <= block_elems
    (down to the hard-minimum 8x128 tile), preferring a large batch tile."""
    B8 = _round_up(max(B, 1), 8)
    T128 = _round_up(max(T, 1), 128)

    # Batch tile first (better-shaped epilogue matmul): up to 256 rows, bounded
    # by the budget at the minimum 128-token slice and by the padded batch size.
    tb = (block_elems // (128 * D) // 8) * 8
    tb = max(8, min(tb, 256, B8))
    # Keep >= 2 batch grid steps whenever B allows it so both v7x TensorCores
    # get work on the "parallel" axis (harmless extra grid step on v5e/v6e).
    if B8 >= 16:
        tb = min(tb, max(8, (B8 // 2 // 8) * 8))

    # Token tile from the remaining budget, bounded by the padded seq length.
    tt = (block_elems // (tb * D) // 128) * 128
    tt = max(128, min(tt, T128))

    return tb, tt, _round_up(B, tb), _round_up(T, tt)


def dan_sequence_to_vector(vector_sequence, sequence_mask, weight, bias, num_layers):
    """weight/bias in PyTorch nn.Linear layout: weight (D_out, D_in), bias (D,)."""
    B, T, D = vector_sequence.shape
    x = vector_sequence
    mask = sequence_mask.astype(jnp.float32)         # exact 0/1, cheap (1/D of x)
    weight_t = weight.T                              # kernel computes avg @ W^T
    bias2d = bias.reshape(1, D)

    isz = jnp.dtype(x.dtype).itemsize
    w_isz = jnp.dtype(weight.dtype).itemsize

    vmem_limit = _vmem_limit_bytes()
    # Per-block-element VMEM cost: 2x double-buffered x stream + in-kernel
    # product temp (input dtype) + f32 convert temp + amortized mask buffers /
    # accumulators / epilogue temporaries.  Resident weight+bias are reserved
    # separately (single-buffered), plus a fixed safety margin.
    reserve = (D * D + D) * w_isz + 2 * 1024 * 1024
    per_elem = 3 * isz + 5
    block_elems = (vmem_limit - reserve) // per_elem
    block_elems = min(block_elems, (16 * 1024 * 1024) // isz)   # >16 MiB adds nothing
    block_elems = max(block_elems, 8 * 128 * D)                 # minimum viable tile

    tb, tt, B_pad, T_pad = _choose_tiles(B, T, D, block_elems)

    # Host-side padding keeps block shapes bounded and semantics exact:
    # padded tokens carry mask == 0 (masked sum unchanged), padded batch rows
    # are sliced off below.
    if (B_pad, T_pad) != (B, T):
        x = jnp.pad(x, ((0, B_pad - B), (0, T_pad - T), (0, 0)))
        mask = jnp.pad(mask, ((0, B_pad - B), (0, T_pad - T)))

    grid = (B_pad // tb, T_pad // tt)
    kernel = functools.partial(dan_kernel, num_layers=num_layers)

    def _run(const_pipeline_mode):
        grid_spec = pltpu.PrefetchScalarGridSpec(
            num_scalar_prefetch=0,
            grid=grid,
            in_specs=[
                pl.BlockSpec((tb, tt, D), lambda b, t: (b, t, 0)),     # x: streamed
                pl.BlockSpec((tb, tt), lambda b, t: (b, t)),           # mask: streamed
                pl.BlockSpec((D, D), lambda b, t: (0, 0),              # weight: resident
                             pipeline_mode=const_pipeline_mode),
                pl.BlockSpec((1, D), lambda b, t: (0, 0),              # bias: resident
                             pipeline_mode=const_pipeline_mode),
            ],
            out_specs=(
                pl.BlockSpec((tb, D), lambda b, t: (b, 0)),
                pl.BlockSpec((tb, num_layers, D), lambda b, t: (b, 0, 0)),
            ),
            scratch_shapes=[
                pltpu.VMEM((tb, D), jnp.float32),   # masked token-sum accumulator
                pltpu.VMEM((tb, 1), jnp.float32),   # token-count accumulator
            ],
        )
        return pl.pallas_call(
            kernel,
            out_shape=(
                jax.ShapeDtypeStruct((B_pad, D), jnp.float32),
                jax.ShapeDtypeStruct((B_pad, num_layers, D), jnp.float32),
            ),
            grid_spec=grid_spec,
            compiler_params=pltpu.CompilerParams(
                dimension_semantics=("parallel", "arbitrary"),
                vmem_limit_bytes=vmem_limit,
            ),
        )(x, mask, weight_t, bias2d)

    try:
        # Constant index_map => multi-buffering the weight/bias only wastes VMEM;
        # request single buffering and spend that VMEM on bigger x blocks.
        combined, layer_reps = _run(pl.Buffered(1))
    except Exception:
        # Stricter/older Pallas versions may reject single-buffered operands;
        # fall back to the default double-buffered pipeline (still correct).
        combined, layer_reps = _run(None)

    if B_pad != B:
        combined = combined[:B]
        layer_reps = layer_reps[:B]
    return {"combined_vector": combined, "layer_representations": layer_reps}


if __name__ == "__main__":
    B, T, D = 2, 8, 32
    num_layers = 3

    key = jax.random.PRNGKey(0)
    kx, kw, kb = jax.random.split(key, 3)

    x = jax.random.normal(kx, (B, T, D), dtype=jnp.float32)
    # deterministic mask: first few tokens real, rest padding
    mask = (jnp.arange(T)[None, :] < jnp.array([[6], [4]])).astype(jnp.float32)  # (B, T)

    # nn.Linear(D, D) parameters (PyTorch layout: weight (out, in), bias (out,)).
    bound = 1.0 / jnp.sqrt(D)
    weight = jax.random.uniform(kw, (D, D), minval=-bound, maxval=bound, dtype=jnp.float32)
    bias = jax.random.uniform(kb, (D,), minval=-bound, maxval=bound, dtype=jnp.float32)

    out = dan_sequence_to_vector(x, mask, weight, bias, num_layers)
    jax.block_until_ready(out)

    # pure-JAX reference check (training=False path of DanSequenceToVector)
    num_len = jnp.sum(mask, axis=1, keepdims=True)
    avg = jnp.sum(x * mask[:, :, None], axis=1) / num_len
    y_ref = avg @ weight.T + bias
    reps_ref = jnp.stack([jnp.maximum(y_ref, 0.0)] * (num_layers - 1) + [y_ref], axis=1)

    assert out["combined_vector"].shape == (B, D)
    assert out["layer_representations"].shape == (B, num_layers, D)
    assert jnp.allclose(out["combined_vector"], y_ref, atol=1e-4, rtol=1e-4)
    assert jnp.allclose(out["layer_representations"], reps_ref, atol=1e-4, rtol=1e-4)

    print("KERNEL_OK")
</pallas_src>

<mosaic_0001>
module attributes {stable_mosaic.version = 11 : i64} {
  func.func @dan_kernel(%arg0: i32, %arg1: i32, %arg2: memref<8x128x32xf32, #tpu.memory_space<vmem>>, %arg3: memref<8x128xf32, #tpu.memory_space<vmem>>, %arg4: memref<32x32xf32, #tpu.memory_space<vmem>>, %arg5: memref<1x32xf32, #tpu.memory_space<vmem>>, %arg6: memref<8x32xf32, #tpu.memory_space<vmem>>, %arg7: memref<8x3x32xf32, #tpu.memory_space<vmem>>, %arg8: memref<8x32xf32, #tpu.memory_space<vmem>>, %arg9: memref<8x1xf32, #tpu.memory_space<vmem>>) attributes {dimension_semantics = [#tpu.dimension_semantics<parallel>, #tpu.dimension_semantics<arbitrary>], iteration_bounds = array<i64: 1, 1>, scalar_prefetch = 0 : i64, scratch_operands = 2 : i64, tpu.core_type = #tpu.core_type<tc>, window_params = [{transform_indices = @transform_0, window_bounds = array<i64: 8, 128, 32>}, {transform_indices = @transform_1, window_bounds = array<i64: 8, 128>}, {pipeline_mode = #tpu.pipeline_mode<synchronous>, transform_indices = @transform_2, window_bounds = array<i64: 32, 32>}, {pipeline_mode = #tpu.pipeline_mode<synchronous>, transform_indices = @transform_3, window_bounds = array<i64: 1, 32>}, {transform_indices = @transform_4, window_bounds = array<i64: 8, 32>}, {transform_indices = @transform_5, window_bounds = array<i64: 8, 3, 32>}]} {
    %c0_i32 = arith.constant 0 : i32
    %0 = arith.cmpi eq, %arg1, %c0_i32 : i32
    %1 = arith.extui %0 : i1 to i32
    %c0_i32_0 = arith.constant 0 : i32
    %2 = arith.cmpi ne, %1, %c0_i32_0 : i32
    scf.if %2 {
      %cst_16 = arith.constant 0.000000e+00 : f32
      %20 = vector.broadcast %cst_16 : f32 to vector<8x32xf32>
      %c0_17 = arith.constant 0 : index
      %c0_18 = arith.constant 0 : index
      %21 = vector.load %arg8[%c0_17, %c0_18] : memref<8x32xf32, #tpu.memory_space<vmem>>, vector<8x32xf32>
      tpu.vector_store %arg8[%c0_17, %c0_18], %20 {strides = array<i32>} : memref<8x32xf32, #tpu.memory_space<vmem>>, vector<8x32xf32>,
      %cst_19 = arith.constant 0.000000e+00 : f32
      %22 = vector.broadcast %cst_19 : f32 to vector<8x1xf32>
      %c0_20 = arith.constant 0 : index
      %c0_21 = arith.constant 0 : index
      %23 = vector.load %arg9[%c0_20, %c0_21] : memref<8x1xf32, #tpu.memory_space<vmem>>, vector<8x1xf32>
      tpu.vector_store %arg9[%c0_20, %c0_21], %22 {strides = array<i32>} : memref<8x1xf32, #tpu.memory_space<vmem>>, vector<8x1xf32>,
    } else {
    }
    %c0 = arith.constant 0 : index
    %c0_1 = arith.constant 0 : index
    %c0_2 = arith.constant 0 : index
    %3 = vector.load %arg2[%c0, %c0_1, %c0_2] : memref<8x128x32xf32, #tpu.memory_space<vmem>>, vector<8x128x32xf32>
    %c0_3 = arith.constant 0 : index
    %c0_4 = arith.constant 0 : index
    %4 = vector.load %arg3[%c0_3, %c0_4] : memref<8x128xf32, #tpu.memory_space<vmem>>, vector<8x128xf32>
    %5 = vector.shape_cast %4 : vector<8x128xf32> to vector<8x128x1xf32>
    %6 = vector.broadcast %5 : vector<8x128x1xf32> to vector<8x128x32xf32>
    %7 = arith.mulf %3, %6 : vector<8x128x32xf32>
    %c0_5 = arith.constant 0 : index
    %c0_6 = arith.constant 0 : index
    %8 = vector.load %arg8[%c0_5, %c0_6] : memref<8x32xf32, #tpu.memory_space<vmem>>, vector<8x32xf32>
    %cst = arith.constant dense<0.000000e+00> : vector<8x32xf32>
    %9 = vector.multi_reduction <add>, %7, %cst [1] : vector<8x128x32xf32> to vector<8x32xf32>
    %10 = arith.addf %8, %9 : vector<8x32xf32>
    %c0_7 = arith.constant 0 : index
    %c0_8 = arith.constant 0 : index
    %11 = vector.load %arg8[%c0_7, %c0_8] : memref<8x32xf32, #tpu.memory_space<vmem>>, vector<8x32xf32>
    tpu.vector_store %arg8[%c0_7, %c0_8], %10 {strides = array<i32>} : memref<8x32xf32, #tpu.memory_space<vmem>>, vector<8x32xf32>,
    %c0_9 = arith.constant 0 : index
    %c0_10 = arith.constant 0 : index
    %12 = vector.load %arg9[%c0_9, %c0_10] : memref<8x1xf32, #tpu.memory_space<vmem>>, vector<8x1xf32>
    %cst_11 = arith.constant dense<0.000000e+00> : vector<8xf32>
    %13 = vector.multi_reduction <add>, %4, %cst_11 [1] : vector<8x128xf32> to vector<8xf32>
    %14 = vector.shape_cast %13 : vector<8xf32> to vector<8x1xf32>
    %15 = arith.addf %12, %14 : vector<8x1xf32>
    %c0_12 = arith.constant 0 : index
    %c0_13 = arith.constant 0 : index
    %16 = vector.load %arg9[%c0_12, %c0_13] : memref<8x1xf32, #tpu.memory_space<vmem>>, vector<8x1xf32>
    tpu.vector_store %arg9[%c0_12, %c0_13], %15 {strides = array<i32>} : memref<8x1xf32, #tpu.memory_space<vmem>>, vector<8x1xf32>,
    %c0_i32_14 = arith.constant 0 : i32
    %17 = arith.cmpi eq, %arg1, %c0_i32_14 : i32
    %18 = arith.extui %17 : i1 to i32
    %c0_i32_15 = arith.constant 0 : i32
    %19 = arith.cmpi ne, %18, %c0_i32_15 : i32
    scf.if %19 {
      %c0_16 = arith.constant 0 : index
      %c0_17 = arith.constant 0 : index
      %20 = vector.load %arg8[%c0_16, %c0_17] : memref<8x32xf32, #tpu.memory_space<vmem>>, vector<8x32xf32>
      %c0_18 = arith.constant 0 : index
      %c0_19 = arith.constant 0 : index
      %21 = vector.load %arg9[%c0_18, %c0_19] : memref<8x1xf32, #tpu.memory_space<vmem>>, vector<8x1xf32>
      %22 = vector.broadcast %21 : vector<8x1xf32> to vector<8x32xf32>
      %23 = arith.divf %20, %22 : vector<8x32xf32>
      %c0_20 = arith.constant 0 : index
      %c0_21 = arith.constant 0 : index
      %24 = vector.load %arg4[%c0_20, %c0_21] : memref<32x32xf32, #tpu.memory_space<vmem>>, vector<32x32xf32>
      %cst_22 = arith.constant dense<0.000000e+00> : vector<8x32xf32>
      %25 = tpu.matmul %23, %24, %cst_22 {dimension_numbers = #tpu.dot_dimension_numbers<[1], [0], [0], [1], [0, 0, 1, 1], [], []>} : vector<8x32xf32>, vector<32x32xf32>, vector<8x32xf32> -> vector<8x32xf32>
      %c0_23 = arith.constant 0 : index
      %c0_24 = arith.constant 0 : index
      %26 = vector.load %arg5[%c0_23, %c0_24] : memref<1x32xf32, #tpu.memory_space<vmem>>, vector<1x32xf32>
      %27 = vector.broadcast %26 : vector<1x32xf32> to vector<8x32xf32>
      %28 = arith.addf %25, %27 : vector<8x32xf32>
      %cst_25 = arith.constant 0.000000e+00 : f32
      %29 = vector.broadcast %cst_25 : f32 to vector<8x32xf32>
      %30 = arith.maximumf %28, %29 : vector<8x32xf32>
      %c0_26 = arith.constant 0 : index
      %c0_27 = arith.constant 0 : index
      %31 = vector.load %arg6[%c0_26, %c0_27] : memref<8x32xf32, #tpu.memory_space<vmem>>, vector<8x32xf32>
      tpu.vector_store %arg6[%c0_26, %c0_27], %28 {strides = array<i32>} : memref<8x32xf32, #tpu.memory_space<vmem>>, vector<8x32xf32>,
      %32 = vector.shape_cast %30 : vector<8x32xf32> to vector<8x1x32xf32>
      %33 = vector.shape_cast %32 : vector<8x1x32xf32> to vector<8x1x32xf32>
      %34 = vector.broadcast %33 : vector<8x1x32xf32> to vector<8x2x32xf32>
      %c0_28 = arith.constant 0 : index
      %c0_29 = arith.constant 0 : index
      %c0_30 = arith.constant 0 : index
      %35 = vector.load %arg7[%c0_28, %c0_29, %c0_30] : memref<8x3x32xf32, #tpu.memory_space<vmem>>, vector<8x2x32xf32>
      tpu.vector_store %arg7[%c0_28, %c0_29, %c0_30], %34 {strides = array<i32>} : memref<8x3x32xf32, #tpu.memory_space<vmem>>, vector<8x2x32xf32>,
      %36 = vector.shape_cast %28 : vector<8x32xf32> to vector<8x1x32xf32>
      %c0_31 = arith.constant 0 : index
      %c2 = arith.constant 2 : index
      %c0_32 = arith.constant 0 : index
      %37 = vector.load %arg7[%c0_31, %c2, %c0_32] : memref<8x3x32xf32, #tpu.memory_space<vmem>>, vector<8x1x32xf32>
      tpu.vector_store %arg7[%c0_31, %c2, %c0_32], %36 {strides = array<i32>} : memref<8x3x32xf32, #tpu.memory_space<vmem>>, vector<8x1x32xf32>,
    } else {
    }
    return
  }
  func.func @transform_0(%arg0: i32, %arg1: i32) -> (i32, i32, i32) {
    %c0_i32 = arith.constant 0 : i32
    %c0_i32_0 = arith.constant 0 : i32
    return %arg0, %arg1, %c0_i32 : i32, i32, i32
  }
  func.func @transform_1(%arg0: i32, %arg1: i32) -> (i32, i32) {
    %c0_i32 = arith.constant 0 : i32
    return %arg0, %arg1 : i32, i32
  }
  func.func @transform_2(%arg0: i32, %arg1: i32) -> (i32, i32) {
    %c0_i32 = arith.constant 0 : i32
    %c0_i32_0 = arith.constant 0 : i32
    %c0_i32_1 = arith.constant 0 : i32
    return %c0_i32, %c0_i32_0 : i32, i32
  }
  func.func @transform_3(%arg0: i32, %arg1: i32) -> (i32, i32) {
    %c0_i32 = arith.constant 0 : i32
    %c0_i32_0 = arith.constant 0 : i32
    %c0_i32_1 = arith.constant 0 : i32
    return %c0_i32, %c0_i32_0 : i32, i32
  }
  func.func @transform_4(%arg0: i32, %arg1: i32) -> (i32, i32) {
    %c0_i32 = arith.constant 0 : i32
    %c0_i32_0 = arith.constant 0 : i32
    return %arg0, %c0_i32 : i32, i32
  }
  func.func @transform_5(%arg0: i32, %arg1: i32) -> (i32, i32, i32) {
    %c0_i32 = arith.constant 0 : i32
    %c0_i32_0 = arith.constant 0 : i32
    %c0_i32_1 = arith.constant 0 : i32
    return %arg0, %c0_i32, %c0_i32_0 : i32, i32, i32
  }
}

module attributes {stable_mosaic.version = 11 : i64} {
  func.func @dan_kernel(%arg0: i32, %arg1: i32, %arg2: memref<8x128x32xf32, #tpu.memory_space<vmem>>, %arg3: memref<8x128xf32, #tpu.memory_space<vmem>>, %arg4: memref<32x32xf32, #tpu.memory_space<vmem>>, %arg5: memref<1x32xf32, #tpu.memory_space<vmem>>, %arg6: memref<8x32xf32, #tpu.memory_space<vmem>>, %arg7: memref<8x3x32xf32, #tpu.memory_space<vmem>>, %arg8: memref<8x32xf32, #tpu.memory_space<vmem>>, %arg9: memref<8x1xf32, #tpu.memory_space<vmem>>) attributes {dimension_semantics = [#tpu.dimension_semantics<parallel>, #tpu.dimension_semantics<arbitrary>], iteration_bounds = array<i64: 1, 1>, scalar_prefetch = 0 : i64, scratch_operands = 2 : i64, tpu.core_type = #tpu.core_type<tc>, window_params = [{transform_indices = @transform_0, window_bounds = array<i64: 8, 128, 32>}, {transform_indices = @transform_1, window_bounds = array<i64: 8, 128>}, {pipeline_mode = #tpu.pipeline_mode<synchronous>, transform_indices = @transform_2, window_bounds = array<i64: 32, 32>}, {pipeline_mode = #tpu.pipeline_mode<synchronous>, transform_indices = @transform_3, window_bounds = array<i64: 1, 32>}, {transform_indices = @transform_4, window_bounds = array<i64: 8, 32>}, {transform_indices = @transform_5, window_bounds = array<i64: 8, 3, 32>}]} {
    %c0_i32 = arith.constant 0 : i32
    %0 = arith.cmpi eq, %arg1, %c0_i32 : i32
    %1 = arith.extui %0 : i1 to i32
    %c0_i32_0 = arith.constant 0 : i32
    %2 = arith.cmpi ne, %1, %c0_i32_0 : i32
    scf.if %2 {
      %cst_16 = arith.constant 0.000000e+00 : f32
      %20 = vector.broadcast %cst_16 : f32 to vector<8x32xf32>
      %c0_17 = arith.constant 0 : index
      %c0_18 = arith.constant 0 : index
      %21 = vector.load %arg8[%c0_17, %c0_18] : memref<8x32xf32, #tpu.memory_space<vmem>>, vector<8x32xf32>
      tpu.vector_store %arg8[%c0_17, %c0_18], %20 {strides = array<i32>} : memref<8x32xf32, #tpu.memory_space<vmem>>, vector<8x32xf32>,
      %cst_19 = arith.constant 0.000000e+00 : f32
      %22 = vector.broadcast %cst_19 : f32 to vector<8x1xf32>
      %c0_20 = arith.constant 0 : index
      %c0_21 = arith.constant 0 : index
      %23 = vector.load %arg9[%c0_20, %c0_21] : memref<8x1xf32, #tpu.memory_space<vmem>>, vector<8x1xf32>
      tpu.vector_store %arg9[%c0_20, %c0_21], %22 {strides = array<i32>} : memref<8x1xf32, #tpu.memory_space<vmem>>, vector<8x1xf32>,
    } else {
    }
    %c0 = arith.constant 0 : index
    %c0_1 = arith.constant 0 : index
    %c0_2 = arith.constant 0 : index
    %3 = vector.load %arg2[%c0, %c0_1, %c0_2] : memref<8x128x32xf32, #tpu.memory_space<vmem>>, vector<8x128x32xf32>
    %c0_3 = arith.constant 0 : index
    %c0_4 = arith.constant 0 : index
    %4 = vector.load %arg3[%c0_3, %c0_4] : memref<8x128xf32, #tpu.memory_space<vmem>>, vector<8x128xf32>
    %5 = vector.shape_cast %4 : vector<8x128xf32> to vector<8x128x1xf32>
    %6 = vector.broadcast %5 : vector<8x128x1xf32> to vector<8x128x32xf32>
    %7 = arith.mulf %3, %6 : vector<8x128x32xf32>
    %c0_5 = arith.constant 0 : index
    %c0_6 = arith.constant 0 : index
    %8 = vector.load %arg8[%c0_5, %c0_6] : memref<8x32xf32, #tpu.memory_space<vmem>>, vector<8x32xf32>
    %cst = arith.constant dense<0.000000e+00> : vector<8x32xf32>
    %9 = vector.multi_reduction <add>, %7, %cst [1] : vector<8x128x32xf32> to vector<8x32xf32>
    %10 = arith.addf %8, %9 : vector<8x32xf32>
    %c0_7 = arith.constant 0 : index
    %c0_8 = arith.constant 0 : index
    %11 = vector.load %arg8[%c0_7, %c0_8] : memref<8x32xf32, #tpu.memory_space<vmem>>, vector<8x32xf32>
    tpu.vector_store %arg8[%c0_7, %c0_8], %10 {strides = array<i32>} : memref<8x32xf32, #tpu.memory_space<vmem>>, vector<8x32xf32>,
    %c0_9 = arith.constant 0 : index
    %c0_10 = arith.constant 0 : index
    %12 = vector.load %arg9[%c0_9, %c0_10] : memref<8x1xf32, #tpu.memory_space<vmem>>, vector<8x1xf32>
    %cst_11 = arith.constant dense<0.000000e+00> : vector<8xf32>
    %13 = vector.multi_reduction <add>, %4, %cst_11 [1] : vector<8x128xf32> to vector<8xf32>
    %14 = vector.shape_cast %13 : vector<8xf32> to vector<8x1xf32>
    %15 = arith.addf %12, %14 : vector<8x1xf32>
    %c0_12 = arith.constant 0 : index
    %c0_13 = arith.constant 0 : index
    %16 = vector.load %arg9[%c0_12, %c0_13] : memref<8x1xf32, #tpu.memory_space<vmem>>, vector<8x1xf32>
    tpu.vector_store %arg9[%c0_12, %c0_13], %15 {strides = array<i32>} : memref<8x1xf32, #tpu.memory_space<vmem>>, vector<8x1xf32>,
    %c0_i32_14 = arith.constant 0 : i32
    %17 = arith.cmpi eq, %arg1, %c0_i32_14 : i32
    %18 = arith.extui %17 : i1 to i32
    %c0_i32_15 = arith.constant 0 : i32
    %19 = arith.cmpi ne, %18, %c0_i32_15 : i32
    scf.if %19 {
      %c0_16 = arith.constant 0 : index
      %c0_17 = arith.constant 0 : index
      %20 = vector.load %arg8[%c0_16, %c0_17] : memref<8x32xf32, #tpu.memory_space<vmem>>, vector<8x32xf32>
      %c0_18 = arith.constant 0 : index
      %c0_19 = arith.constant 0 : index
      %21 = vector.load %arg9[%c0_18, %c0_19] : memref<8x1xf32, #tpu.memory_space<vmem>>, vector<8x1xf32>
      %22 = vector.broadcast %21 : vector<8x1xf32> to vector<8x32xf32>
      %23 = arith.divf %20, %22 : vector<8x32xf32>
      %c0_20 = arith.constant 0 : index
      %c0_21 = arith.constant 0 : index
      %24 = vector.load %arg4[%c0_20, %c0_21] : memref<32x32xf32, #tpu.memory_space<vmem>>, vector<32x32xf32>
      %cst_22 = arith.constant dense<0.000000e+00> : vector<8x32xf32>
      %25 = tpu.matmul %23, %24, %cst_22 {dimension_numbers = #tpu.dot_dimension_numbers<[1], [0], [0], [1], [0, 0, 1, 1], [], []>} : vector<8x32xf32>, vector<32x32xf32>, vector<8x32xf32> -> vector<8x32xf32>
      %c0_23 = arith.constant 0 : index
      %c0_24 = arith.constant 0 : index
      %26 = vector.load %arg5[%c0_23, %c0_24] : memref<1x32xf32, #tpu.memory_space<vmem>>, vector<1x32xf32>
      %27 = vector.broadcast %26 : vector<1x32xf32> to vector<8x32xf32>
      %28 = arith.addf %25, %27 : vector<8x32xf32>
      %cst_25 = arith.constant 0.000000e+00 : f32
      %29 = vector.broadcast %cst_25 : f32 to vector<8x32xf32>
      %30 = arith.maximumf %28, %29 : vector<8x32xf32>
      %c0_26 = arith.constant 0 : index
      %c0_27 = arith.constant 0 : index
      %31 = vector.load %arg6[%c0_26, %c0_27] : memref<8x32xf32, #tpu.memory_space<vmem>>, vector<8x32xf32>
      tpu.vector_store %arg6[%c0_26, %c0_27], %28 {strides = array<i32>} : memref<8x32xf32, #tpu.memory_space<vmem>>, vector<8x32xf32>,
      %32 = vector.shape_cast %30 : vector<8x32xf32> to vector<8x1x32xf32>
      %33 = vector.shape_cast %32 : vector<8x1x32xf32> to vector<8x1x32xf32>
      %34 = vector.broadcast %33 : vector<8x1x32xf32> to vector<8x2x32xf32>
      %c0_28 = arith.constant 0 : index
      %c0_29 = arith.constant 0 : index
      %c0_30 = arith.constant 0 : index
      %35 = vector.load %arg7[%c0_28, %c0_29, %c0_30] : memref<8x3x32xf32, #tpu.memory_space<vmem>>, vector<8x2x32xf32>
      tpu.vector_store %arg7[%c0_28, %c0_29, %c0_30], %34 {strides = array<i32>} : memref<8x3x32xf32, #tpu.memory_space<vmem>>, vector<8x2x32xf32>,
      %36 = vector.shape_cast %28 : vector<8x32xf32> to vector<8x1x32xf32>
      %c0_31 = arith.constant 0 : index
      %c2 = arith.constant 2 : index
      %c0_32 = arith.constant 0 : index
      %37 = vector.load %arg7[%c0_31, %c2, %c0_32] : memref<8x3x32xf32, #tpu.memory_space<vmem>>, vector<8x1x32xf32>
      tpu.vector_store %arg7[%c0_31, %c2, %c0_32], %36 {strides = array<i32>} : memref<8x3x32xf32, #tpu.memory_space<vmem>>, vector<8x1x32xf32>,
    } else {
    }
    return
  }
  func.func @transform_0(%arg0: i32, %arg1: i32) -> (i32, i32, i32) {
    %c0_i32 = arith.constant 0 : i32
    %c0_i32_0 = arith.constant 0 : i32
    return %arg0, %arg1, %c0_i32 : i32, i32, i32
  }
  func.func @transform_1(%arg0: i32, %arg1: i32) -> (i32, i32) {
    %c0_i32 = arith.constant 0 : i32
    return %arg0, %arg1 : i32, i32
  }
  func.func @transform_2(%arg0: i32, %arg1: i32) -> (i32, i32) {
    %c0_i32 = arith.constant 0 : i32
    %c0_i32_0 = arith.constant 0 : i32
    %c0_i32_1 = arith.constant 0 : i32
    return %c0_i32, %c0_i32_0 : i32, i32
  }
  func.func @transform_3(%arg0: i32, %arg1: i32) -> (i32, i32) {
    %c0_i32 = arith.constant 0 : i32
    %c0_i32_0 = arith.constant 0 : i32
    %c0_i32_1 = arith.constant 0 : i32
    return %c0_i32, %c0_i32_0 : i32, i32
  }
  func.func @transform_4(%arg0: i32, %arg1: i32) -> (i32, i32) {
    %c0_i32 = arith.constant 0 : i32
    %c0_i32_0 = arith.constant 0 : i32
    return %arg0, %c0_i32 : i32, i32
  }
  func.func @transform_5(%arg0: i32, %arg1: i32) -> (i32, i32, i32) {
    %c0_i32 = arith.constant 0 : i32
    %c0_i32_0 = arith.constant 0 : i32
    %c0_i32_1 = arith.constant 0 : i32
    return %arg0, %c0_i32, %c0_i32_0 : i32, i32, i32
  }
}

</mosaic_0001>

<llo_original>
// kernel: tpu_custom_call.1
$region0: #{tpu_custom_call.1}
  #allocation0 [shape = 'u32[]', space=smem, size = 0x4, offset = 0x4, fixed_abs, tag = 'smem constant byte address 0x4 - core index']
  #allocation1 [shape = 'u32[144,128]{1,0:T(1,128)}', space=vmem, size = 0x12000, scoped, tag = 'internal scratch']
  #allocation2 [shape = 'f32[8,32]{1,0:T(8,128)}', space=vmem, size = 0x1000, scoped, tag = 'scratch operand']
  #allocation3 [shape = 'f32[8,1]{1,0:T(8,128)}', space=vmem, size = 0x1000, scoped, tag = 'scratch operand']
  %s0 = inlined_call_operand.vmem [shape: f32[8,128,32], index: 0, kind: input, shape index: {}]
  %s1 = inlined_call_operand.vmem [shape: f32[8,128], index: 1, kind: input, shape index: {}]
  %s2 = inlined_call_operand.vmem [shape: f32[32,32], index: 2, kind: input, shape index: {}]
  %s3 = inlined_call_operand.vmem [shape: f32[1,32], index: 3, kind: input, shape index: {}]
  %s4 = inlined_call_operand.hbm [shape: f32[8,32], index: 4, kind: output, shape index: {0}]
  %s5 = inlined_call_operand.vmem [shape: f32[8,3,32], index: 5, kind: output, shape index: {1}]
  %6 = xla_tuple %s4, %s5
  %s7 = sld [smem:[#allocation0]]
  $region42: #{tpu_custom_call.1} parent=0
    _
  %s9 = ssub.s32 1, %s7
  %s10 = scalar_select 0, %s9, %s7
  $region1: #{tpu_custom_call.1} parent=0
    #allocation4 [shape = 'u8[4096]{0}', space=vmem, size = 0x1000, scoped, tag = 'output window, operand 0, single buffered']
    #allocation5 [shape = 's32[1]{0}', space=sflag, size = 0x4, scoped, tag = 'scoped memory for tpu_custom_call.1']
    %11 = vsyncpa [#allocation5], 0
    // Predicated region
    $region2: #{tpu_custom_call.1} parent=1 // pred_check
      _
    $region3: #{tpu_custom_call.1} parent=1 // pred_check_branch
      %13 = sbr.rel (0) target = $region5
    $region4: #{tpu_custom_call.1} parent=1 // pred_region
      _
    $region5: #{tpu_custom_call.1} parent=1 // pred_fallthru
      _
    // Predicated region
    $region6: #{tpu_custom_call.1} parent=1 // pred_check
      _
    $region7: #{tpu_custom_call.1} parent=1 // pred_check_branch
      %15 = sbr.rel (0) target = $region9
    $region8: #{tpu_custom_call.1} parent=1 // pred_region
      _
    $region9: #{tpu_custom_call.1} parent=1 // pred_fallthru
      _
    // Predicated region
    $region10: #{tpu_custom_call.1} parent=1 // pred_check
      _
    $region11: #{tpu_custom_call.1} parent=1 // pred_check_branch
      %17 = sbr.rel (0) target = $region13
    $region12: #{tpu_custom_call.1} parent=1 // pred_region
      _
    $region13: #{tpu_custom_call.1} parent=1 // pred_fallthru
      _
    // Predicated region
    $region14: #{tpu_custom_call.1} parent=1 // pred_check
      _
    $region15: #{tpu_custom_call.1} parent=1 // pred_check_branch
      %19 = sbr.rel (0) target = $region17
    $region16: #{tpu_custom_call.1} parent=1 // pred_region
      _
    $region17: #{tpu_custom_call.1} parent=1 // pred_fallthru
      _
    %p20 = scmp.eq.s32.totalorder 0, 0
    // Predicated region
    $region18: #{tpu_custom_call.1} parent=1 // pred_check
      %p21 = pneg %p20
    $region19: #{tpu_custom_call.1} parent=1 // pred_check_branch
      %23 = sbr.rel (%p21) target = $region21
    $region20: #{tpu_custom_call.1} parent=1 // pred_region
      %vm24 = vcmask 261120
      %25 = vst.msk [vmem:[#allocation2] sm:$0xff] %vm24, 0.0
      %vm26 = vcmask 7168
      %27 = vst.msk [vmem:[#allocation3] sm:$0xff] %vm26, 0.0
    $region21: #{tpu_custom_call.1} parent=1 // pred_fallthru
      _
    %v28 = vld [vmem:[%s0] sm:$0xff]
    %v29 = vld [vmem:[%s0 + $0x8] sm:$0xff]
    %v30 = vld [vmem:[%s0 + $0x10] sm:$0xff]
    %v31 = vld [vmem:[%s0 + $0x18] sm:$0xff]
    %v32 = vld [vmem:[%s0 + $0x20] sm:$0xff]
    %v33 = vld [vmem:[%s0 + $0x28] sm:$0xff]
    %v34 = vld [vmem:[%s0 + $0x30] sm:$0xff]
    %v35 = vld [vmem:[%s0 + $0x38] sm:$0xff]
    %v36 = vld [vmem:[%s0 + $0x40] sm:$0xff]
    %v37 = vld [vmem:[%s0 + $0x48] sm:$0xff]
    %v38 = vld [vmem:[%s0 + $0x50] sm:$0xff]
    %v39 = vld [vmem:[%s0 + $0x58] sm:$0xff]
    %v40 = vld [vmem:[%s0 + $0x60] sm:$0xff]
    %v41 = vld [vmem:[%s0 + $0x68] sm:$0xff]
    %v42 = vld [vmem:[%s0 + $0x70] sm:$0xff]
    %v43 = vld [vmem:[%s0 + $0x78] sm:$0xff]
    %v44 = vld [vmem:[%s0 + $0x80] sm:$0xff]
    %v45 = vld [vmem:[%s0 + $0x88] sm:$0xff]
    %v46 = vld [vmem:[%s0 + $0x90] sm:$0xff]
    %v47 = vld [vmem:[%s0 + $0x98] sm:$0xff]
    %v48 = vld [vmem:[%s0 + $0xa0] sm:$0xff]
    %v49 = vld [vmem:[%s0 + $0xa8] sm:$0xff]
    %v50 = vld [vmem:[%s0 + $0xb0] sm:$0xff]
    %v51 = vld [vmem:[%s0 + $0xb8] sm:$0xff]
    %v52 = vld [vmem:[%s0 + $0xc0] sm:$0xff]
    %v53 = vld [vmem:[%s0 + $0xc8] sm:$0xff]
    %v54 = vld [vmem:[%s0 + $0xd0] sm:$0xff]
    %v55 = vld [vmem:[%s0 + $0xd8] sm:$0xff]
    %v56 = vld [vmem:[%s0 + $0xe0] sm:$0xff]
    %v57 = vld [vmem:[%s0 + $0xe8] sm:$0xff]
    %v58 = vld [vmem:[%s0 + $0xf0] sm:$0xff]
    %v59 = vld [vmem:[%s0 + $0xf8] sm:$0xff]
    %v60 = vld [vmem:[%s0 + $0x100] sm:$0xff]
    %v61 = vld [vmem:[%s0 + $0x108] sm:$0xff]
    %v62 = vld [vmem:[%s0 + $0x110] sm:$0xff]
    %v63 = vld [vmem:[%s0 + $0x118] sm:$0xff]
    %v64 = vld [vmem:[%s0 + $0x120] sm:$0xff]
    %v65 = vld [vmem:[%s0 + $0x128] sm:$0xff]
    %v66 = vld [vmem:[%s0 + $0x130] sm:$0xff]
    %v67 = vld [vmem:[%s0 + $0x138] sm:$0xff]
    %v68 = vld [vmem:[%s0 + $0x140] sm:$0xff]
    %v69 = vld [vmem:[%s0 + $0x148] sm:$0xff]
    %v70 = vld [vmem:[%s0 + $0x150] sm:$0xff]
    %v71 = vld [vmem:[%s0 + $0x158] sm:$0xff]
    %v72 = vld [vmem:[%s0 + $0x160] sm:$0xff]
    %v73 = vld [vmem:[%s0 + $0x168] sm:$0xff]
    %v74 = vld [vmem:[%s0 + $0x170] sm:$0xff]
    %v75 = vld [vmem:[%s0 + $0x178] sm:$0xff]
    %v76 = vld [vmem:[%s0 + $0x180] sm:$0xff]
    %v77 = vld [vmem:[%s0 + $0x188] sm:$0xff]
    %v78 = vld [vmem:[%s0 + $0x190] sm:$0xff]
    %v79 = vld [vmem:[%s0 + $0x198] sm:$0xff]
    %v80 = vld [vmem:[%s0 + $0x1a0] sm:$0xff]
    %v81 = vld [vmem:[%s0 + $0x1a8] sm:$0xff]
    %v82 = vld [vmem:[%s0 + $0x1b0] sm:$0xff]
    %v83 = vld [vmem:[%s0 + $0x1b8] sm:$0xff]
    %v84 = vld [vmem:[%s0 + $0x1c0] sm:$0xff]
    %v85 = vld [vmem:[%s0 + $0x1c8] sm:$0xff]
    %v86 = vld [vmem:[%s0 + $0x1d0] sm:$0xff]
    %v87 = vld [vmem:[%s0 + $0x1d8] sm:$0xff]
    %v88 = vld [vmem:[%s0 + $0x1e0] sm:$0xff]
    %v89 = vld [vmem:[%s0 + $0x1e8] sm:$0xff]
    %v90 = vld [vmem:[%s0 + $0x1f0] sm:$0xff]
    %v91 = vld [vmem:[%s0 + $0x1f8] sm:$0xff]
    %v92 = vld [vmem:[%s0 + $0x200] sm:$0xff]
    %v93 = vld [vmem:[%s0 + $0x208] sm:$0xff]
    %v94 = vld [vmem:[%s0 + $0x210] sm:$0xff]
    %v95 = vld [vmem:[%s0 + $0x218] sm:$0xff]
    %v96 = vld [vmem:[%s0 + $0x220] sm:$0xff]
    %v97 = vld [vmem:[%s0 + $0x228] sm:$0xff]
    %v98 = vld [vmem:[%s0 + $0x230] sm:$0xff]
    %v99 = vld [vmem:[%s0 + $0x238] sm:$0xff]
    %v100 = vld [vmem:[%s0 + $0x240] sm:$0xff]
    %v101 = vld [vmem:[%s0 + $0x248] sm:$0xff]
    %v102 = vld [vmem:[%s0 + $0x250] sm:$0xff]
    %v103 = vld [vmem:[%s0 + $0x258] sm:$0xff]
    %v104 = vld [vmem:[%s0 + $0x260] sm:$0xff]
    %v105 = vld [vmem:[%s0 + $0x268] sm:$0xff]
    %v106 = vld [vmem:[%s0 + $0x270] sm:$0xff]
    %v107 = vld [vmem:[%s0 + $0x278] sm:$0xff]
    %v108 = vld [vmem:[%s0 + $0x280] sm:$0xff]
    %v109 = vld [vmem:[%s0 + $0x288] sm:$0xff]
    %v110 = vld [vmem:[%s0 + $0x290] sm:$0xff]
    %v111 = vld [vmem:[%s0 + $0x298] sm:$0xff]
    %v112 = vld [vmem:[%s0 + $0x2a0] sm:$0xff]
    %v113 = vld [vmem:[%s0 + $0x2a8] sm:$0xff]
    %v114 = vld [vmem:[%s0 + $0x2b0] sm:$0xff]
    %v115 = vld [vmem:[%s0 + $0x2b8] sm:$0xff]
    %v116 = vld [vmem:[%s0 + $0x2c0] sm:$0xff]
    %v117 = vld [vmem:[%s0 + $0x2c8] sm:$0xff]
    %v118 = vld [vmem:[%s0 + $0x2d0] sm:$0xff]
    %v119 = vld [vmem:[%s0 + $0x2d8] sm:$0xff]
    %v120 = vld [vmem:[%s0 + $0x2e0] sm:$0xff]
    %v121 = vld [vmem:[%s0 + $0x2e8] sm:$0xff]
    %v122 = vld [vmem:[%s0 + $0x2f0] sm:$0xff]
    %v123 = vld [vmem:[%s0 + $0x2f8] sm:$0xff]
    %v124 = vld [vmem:[%s0 + $0x300] sm:$0xff]
    %v125 = vld [vmem:[%s0 + $0x308] sm:$0xff]
    %v126 = vld [vmem:[%s0 + $0x310] sm:$0xff]
    %v127 = vld [vmem:[%s0 + $0x318] sm:$0xff]
    %v128 = vld [vmem:[%s0 + $0x320] sm:$0xff]
    %v129 = vld [vmem:[%s0 + $0x328] sm:$0xff]
    %v130 = vld [vmem:[%s0 + $0x330] sm:$0xff]
    %v131 = vld [vmem:[%s0 + $0x338] sm:$0xff]
    %v132 = vld [vmem:[%s0 + $0x340] sm:$0xff]
    %v133 = vld [vmem:[%s0 + $0x348] sm:$0xff]
    %v134 = vld [vmem:[%s0 + $0x350] sm:$0xff]
    %v135 = vld [vmem:[%s0 + $0x358] sm:$0xff]
    %v136 = vld [vmem:[%s0 + $0x360] sm:$0xff]
    %v137 = vld [vmem:[%s0 + $0x368] sm:$0xff]
    %v138 = vld [vmem:[%s0 + $0x370] sm:$0xff]
    %v139 = vld [vmem:[%s0 + $0x378] sm:$0xff]
    %v140 = vld [vmem:[%s0 + $0x380] sm:$0xff]
    %v141 = vld [vmem:[%s0 + $0x388] sm:$0xff]
    %v142 = vld [vmem:[%s0 + $0x390] sm:$0xff]
    %v143 = vld [vmem:[%s0 + $0x398] sm:$0xff]
    %v144 = vld [vmem:[%s0 + $0x3a0] sm:$0xff]
    %v145 = vld [vmem:[%s0 + $0x3a8] sm:$0xff]
    %v146 = vld [vmem:[%s0 + $0x3b0] sm:$0xff]
    %v147 = vld [vmem:[%s0 + $0x3b8] sm:$0xff]
    %v148 = vld [vmem:[%s0 + $0x3c0] sm:$0xff]
    %v149 = vld [vmem:[%s0 + $0x3c8] sm:$0xff]
    %v150 = vld [vmem:[%s0 + $0x3d0] sm:$0xff]
    %v151 = vld [vmem:[%s0 + $0x3d8] sm:$0xff]
    %v152 = vld [vmem:[%s0 + $0x3e0] sm:$0xff]
    %v153 = vld [vmem:[%s0 + $0x3e8] sm:$0xff]
    %v154 = vld [vmem:[%s0 + $0x3f0] sm:$0xff]
    %v155 = vld [vmem:[%s0 + $0x3f8] sm:$0xff]
    %v156 = vld [vmem:[%s1] sm:$0xff]
    %v157 = vlaneseq
    %v158 = vshrl.u32 %v157, 7
    %v159 = vsub.s32 0, %v158
    %v160 = vrot.slane %v156, %v159
    %162 = vbcast.lane.b32.xlu0 %v160, 256
    %v163 = vpop.permute.xlu0 %162
    %s165 = sor.u32 256, 8
    %166 = vbcast.lane.b32.xlu0 %v160, %s165
    %v167 = vpop.permute.xlu0 %166
    %s169 = sor.u32 256, 16
    %170 = vbcast.lane.b32.xlu0 %v160, %s169
    %v171 = vpop.permute.xlu0 %170
    %s173 = sor.u32 256, 24
    %174 = vbcast.lane.b32.xlu0 %v160, %s173
    %v175 = vpop.permute.xlu0 %174
    %s177 = sor.u32 256, 32
    %178 = vbcast.lane.b32.xlu0 %v160, %s177
    %v179 = vpop.permute.xlu0 %178
    %s181 = sor.u32 256, 40
    %182 = vbcast.lane.b32.xlu0 %v160, %s181
    %v183 = vpop.permute.xlu0 %182
    %s185 = sor.u32 256, 48
    %186 = vbcast.lane.b32.xlu0 %v160, %s185
    %v187 = vpop.permute.xlu0 %186
    %s189 = sor.u32 256, 56
    %190 = vbcast.lane.b32.xlu0 %v160, %s189
    %v191 = vpop.permute.xlu0 %190
    %s193 = sor.u32 256, 64
    %194 = vbcast.lane.b32.xlu0 %v160, %s193
    %v195 = vpop.permute.xlu0 %194
    %s197 = sor.u32 256, 72
    %198 = vbcast.lane.b32.xlu0 %v160, %s197
    %v199 = vpop.permute.xlu0 %198
    %s201 = sor.u32 256, 80
    %202 = vbcast.lane.b32.xlu0 %v160, %s201
    %v203 = vpop.permute.xlu0 %202
    %s205 = sor.u32 256, 88
    %206 = vbcast.lane.b32.xlu0 %v160, %s205
    %v207 = vpop.permute.xlu0 %206
    %s209 = sor.u32 256, 96
    %210 = vbcast.lane.b32.xlu0 %v160, %s209
    %v211 = vpop.permute.xlu0 %210
    %s213 = sor.u32 256, 104
    %214 = vbcast.lane.b32.xlu0 %v160, %s213
    %v215 = vpop.permute.xlu0 %214
    %s217 = sor.u32 256, 112
    %218 = vbcast.lane.b32.xlu0 %v160, %s217
    %v219 = vpop.permute.xlu0 %218
    %s221 = sor.u32 256, 120
    %222 = vbcast.lane.b32.xlu0 %v160, %s221
    %v223 = vpop.permute.xlu0 %222
    %v224 = vlaneseq
    %v225 = vshrl.u32 %v224, 7
    %v226 = vsub.s32 1, %v225
    %v227 = vrot.slane %v156, %v226
    %229 = vbcast.lane.b32.xlu0 %v227, 256
    %v230 = vpop.permute.xlu0 %229
    %s232 = sor.u32 256, 8
    %233 = vbcast.lane.b32.xlu0 %v227, %s232
    %v234 = vpop.permute.xlu0 %233
    %s236 = sor.u32 256, 16
    %237 = vbcast.lane.b32.xlu0 %v227, %s236
    %v238 = vpop.permute.xlu0 %237
    %s240 = sor.u32 256, 24
    %241 = vbcast.lane.b32.xlu0 %v227, %s240
    %v242 = vpop.permute.xlu0 %241
    %s244 = sor.u32 256, 32
    %245 = vbcast.lane.b32.xlu0 %v227, %s244
    %v246 = vpop.permute.xlu0 %245
    %s248 = sor.u32 256, 40
    %249 = vbcast.lane.b32.xlu0 %v227, %s248
    %v250 = vpop.permute.xlu0 %249
    %s252 = sor.u32 256, 48
    %253 = vbcast.lane.b32.xlu0 %v227, %s252
    %v254 = vpop.permute.xlu0 %253
    %s256 = sor.u32 256, 56
    %257 = vbcast.lane.b32.xlu0 %v227, %s256
    %v258 = vpop.permute.xlu0 %257
    %s260 = sor.u32 256, 64
    %261 = vbcast.lane.b32.xlu0 %v227, %s260
    %v262 = vpop.permute.xlu0 %261
    %s264 = sor.u32 256, 72
    %265 = vbcast.lane.b32.xlu0 %v227, %s264
    %v266 = vpop.permute.xlu0 %265
    %s268 = sor.u32 256, 80
    %269 = vbcast.lane.b32.xlu0 %v227, %s268
    %v270 = vpop.permute.xlu0 %269
    %s272 = sor.u32 256, 88
    %273 = vbcast.lane.b32.xlu0 %v227, %s272
    %v274 = vpop.permute.xlu0 %273
    %s276 = sor.u32 256, 96
    %277 = vbcast.lane.b32.xlu0 %v227, %s276
    %v278 = vpop.permute.xlu0 %277
    %s280 = sor.u32 256, 104
    %281 = vbcast.lane.b32.xlu0 %v227, %s280
    %v282 = vpop.permute.xlu0 %281
    %s284 = sor.u32 256, 112
    %285 = vbcast.lane.b32.xlu0 %v227, %s284
    %v286 = vpop.permute.xlu0 %285
    %s288 = sor.u32 256, 120
    %289 = vbcast.lane.b32.xlu0 %v227, %s288
    %v290 = vpop.permute.xlu0 %289
    %v291 = vlaneseq
    %v292 = vshrl.u32 %v291, 7
    %v293 = vsub.s32 2, %v292
    %v294 = vrot.slane %v156, %v293
    %296 = vbcast.lane.b32.xlu0 %v294, 256
    %v297 = vpop.permute.xlu0 %296
    %s299 = sor.u32 256, 8
    %300 = vbcast.lane.b32.xlu0 %v294, %s299
    %v301 = vpop.permute.xlu0 %300
    %s303 = sor.u32 256, 16
    %304 = vbcast.lane.b32.xlu0 %v294, %s303
    %v305 = vpop.permute.xlu0 %304
    %s307 = sor.u32 256, 24
    %308 = vbcast.lane.b32.xlu0 %v294, %s307
    %v309 = vpop.permute.xlu0 %308
    %s311 = sor.u32 256, 32
    %312 = vbcast.lane.b32.xlu0 %v294, %s311
    %v313 = vpop.permute.xlu0 %312
    %s315 = sor.u32 256, 40
    %316 = vbcast.lane.b32.xlu0 %v294, %s315
    %v317 = vpop.permute.xlu0 %316
    %s319 = sor.u32 256, 48
    %320 = vbcast.lane.b32.xlu0 %v294, %s319
    %v321 = vpop.permute.xlu0 %320
    %s323 = sor.u32 256, 56
    %324 = vbcast.lane.b32.xlu0 %v294, %s323
    %v325 = vpop.permute.xlu0 %324
    %s327 = sor.u32 256, 64
    %328 = vbcast.lane.b32.xlu0 %v294, %s327
    %v329 = vpop.permute.xlu0 %328
    %s331 = sor.u32 256, 72
    %332 = vbcast.lane.b32.xlu0 %v294, %s331
    %v333 = vpop.permute.xlu0 %332
    %s335 = sor.u32 256, 80
    %336 = vbcast.lane.b32.xlu0 %v294, %s335
    %v337 = vpop.permute.xlu0 %336
    %s339 = sor.u32 256, 88
    %340 = vbcast.lane.b32.xlu0 %v294, %s339
    %v341 = vpop.permute.xlu0 %340
    %s343 = sor.u32 256, 96
    %344 = vbcast.lane.b32.xlu0 %v294, %s343
    %v345 = vpop.permute.xlu0 %344
    %s347 = sor.u32 256, 104
    %348 = vbcast.lane.b32.xlu0 %v294, %s347
    %v349 = vpop.permute.xlu0 %348
    %s351 = sor.u32 256, 112
    %352 = vbcast.lane.b32.xlu0 %v294, %s351
    %v353 = vpop.permute.xlu0 %352
    %s355 = sor.u32 256, 120
    %356 = vbcast.lane.b32.xlu0 %v294, %s355
    %v357 = vpop.permute.xlu0 %356
    %v358 = vlaneseq
    %v359 = vshrl.u32 %v358, 7
    %v360 = vsub.s32 3, %v359
    %v361 = vrot.slane %v156, %v360
    %363 = vbcast.lane.b32.xlu0 %v361, 256
    %v364 = vpop.permute.xlu0 %363
    %s366 = sor.u32 256, 8
    %367 = vbcast.lane.b32.xlu0 %v361, %s366
    %v368 = vpop.permute.xlu0 %367
    %s370 = sor.u32 256, 16
    %371 = vbcast.lane.b32.xlu0 %v361, %s370
    %v372 = vpop.permute.xlu0 %371
    %s374 = sor.u32 256, 24
    %375 = vbcast.lane.b32.xlu0 %v361, %s374
    %v376 = vpop.permute.xlu0 %375
    %s378 = sor.u32 256, 32
    %379 = vbcast.lane.b32.xlu0 %v361, %s378
    %v380 = vpop.permute.xlu0 %379
    %s382 = sor.u32 256, 40
    %383 = vbcast.lane.b32.xlu0 %v361, %s382
    %v384 = vpop.permute.xlu0 %383
    %s386 = sor.u32 256, 48
    %387 = vbcast.lane.b32.xlu0 %v361, %s386
    %v388 = vpop.permute.xlu0 %387
    %s390 = sor.u32 256, 56
    %391 = vbcast.lane.b32.xlu0 %v361, %s390
    %v392 = vpop.permute.xlu0 %391
    %s394 = sor.u32 256, 64
    %395 = vbcast.lane.b32.xlu0 %v361, %s394
    %v396 = vpop.permute.xlu0 %395
    %s398 = sor.u32 256, 72
    %399 = vbcast.lane.b32.xlu0 %v361, %s398
    %v400 = vpop.permute.xlu0 %399
    %s402 = sor.u32 256, 80
    %403 = vbcast.lane.b32.xlu0 %v361, %s402
    %v404 = vpop.permute.xlu0 %403
    %s406 = sor.u32 256, 88
    %407 = vbcast.lane.b32.xlu0 %v361, %s406
    %v408 = vpop.permute.xlu0 %407
    %s410 = sor.u32 256, 96
    %411 = vbcast.lane.b32.xlu0 %v361, %s410
    %v412 = vpop.permute.xlu0 %411
    %s414 = sor.u32 256, 104
    %415 = vbcast.lane.b32.xlu0 %v361, %s414
    %v416 = vpop.permute.xlu0 %415
    %s418 = sor.u32 256, 112
    %419 = vbcast.lane.b32.xlu0 %v361, %s418
    %v420 = vpop.permute.xlu0 %419
    %s422 = sor.u32 256, 120
    %423 = vbcast.lane.b32.xlu0 %v361, %s422
    %v424 = vpop.permute.xlu0 %423
    %v425 = vlaneseq
    %v426 = vshrl.u32 %v425, 7
    %v427 = vsub.s32 4, %v426
    %v428 = vrot.slane %v156, %v427
    %430 = vbcast.lane.b32.xlu0 %v428, 256
    %v431 = vpop.permute.xlu0 %430
    %s433 = sor.u32 256, 8
    %434 = vbcast.lane.b32.xlu0 %v428, %s433
    %v435 = vpop.permute.xlu0 %434
    %s437 = sor.u32 256, 16
    %438 = vbcast.lane.b32.xlu0 %v428, %s437
    %v439 = vpop.permute.xlu0 %438
    %s441 = sor.u32 256, 24
    %442 = vbcast.lane.b32.xlu0 %v428, %s441
    %v443 = vpop.permute.xlu0 %442
    %s445 = sor.u32 256, 32
    %446 = vbcast.lane.b32.xlu0 %v428, %s445
    %v447 = vpop.permute.xlu0 %446
    %s449 = sor.u32 256, 40
    %450 = vbcast.lane.b32.xlu0 %v428, %s449
    %v451 = vpop.permute.xlu0 %450
    %s453 = sor.u32 256, 48
    %454 = vbcast.lane.b32.xlu0 %v428, %s453
    %v455 = vpop.permute.xlu0 %454
    %s457 = sor.u32 256, 56
    %458 = vbcast.lane.b32.xlu0 %v428, %s457
    %v459 = vpop.permute.xlu0 %458
    %s461 = sor.u32 256, 64
    %462 = vbcast.lane.b32.xlu0 %v428, %s461
    %v463 = vpop.permute.xlu0 %462
    %s465 = sor.u32 256, 72
    %466 = vbcast.lane.b32.xlu0 %v428, %s465
    %v467 = vpop.permute.xlu0 %466
    %s469 = sor.u32 256, 80
    %470 = vbcast.lane.b32.xlu0 %v428, %s469
    %v471 = vpop.permute.xlu0 %470
    %s473 = sor.u32 256, 88
    %474 = vbcast.lane.b32.xlu0 %v428, %s473
    %v475 = vpop.permute.xlu0 %474
    %s477 = sor.u32 256, 96
    %478 = vbcast.lane.b32.xlu0 %v428, %s477
    %v479 = vpop.permute.xlu0 %478
    %s481 = sor.u32 256, 104
    %482 = vbcast.lane.b32.xlu0 %v428, %s481
    %v483 = vpop.permute.xlu0 %482
    %s485 = sor.u32 256, 112
    %486 = vbcast.lane.b32.xlu0 %v428, %s485
    %v487 = vpop.permute.xlu0 %486
    %s489 = sor.u32 256, 120
    %490 = vbcast.lane.b32.xlu0 %v428, %s489
    %v491 = vpop.permute.xlu0 %490
    %v492 = vlaneseq
    %v493 = vshrl.u32 %v492, 7
    %v494 = vsub.s32 5, %v493
    %v495 = vrot.slane %v156, %v494
    %497 = vbcast.lane.b32.xlu0 %v495, 256
    %v498 = vpop.permute.xlu0 %497
    %s500 = sor.u32 256, 8
    %501 = vbcast.lane.b32.xlu0 %v495, %s500
    %v502 = vpop.permute.xlu0 %501
    %s504 = sor.u32 256, 16
    %505 = vbcast.lane.b32.xlu0 %v495, %s504
    %v506 = vpop.permute.xlu0 %505
    %s508 = sor.u32 256, 24
    %509 = vbcast.lane.b32.xlu0 %v495, %s508
    %v510 = vpop.permute.xlu0 %509
    %s512 = sor.u32 256, 32
    %513 = vbcast.lane.b32.xlu0 %v495, %s512
    %v514 = vpop.permute.xlu0 %513
    %s516 = sor.u32 256, 40
    %517 = vbcast.lane.b32.xlu0 %v495, %s516
    %v518 = vpop.permute.xlu0 %517
    %s520 = sor.u32 256, 48
    %521 = vbcast.lane.b32.xlu0 %v495, %s520
    %v522 = vpop.permute.xlu0 %521
    %s524 = sor.u32 256, 56
    %525 = vbcast.lane.b32.xlu0 %v495, %s524
    %v526 = vpop.permute.xlu0 %525
    %s528 = sor.u32 256, 64
    %529 = vbcast.lane.b32.xlu0 %v495, %s528
    %v530 = vpop.permute.xlu0 %529
    %s532 = sor.u32 256, 72
    %533 = vbcast.lane.b32.xlu0 %v495, %s532
    %v534 = vpop.permute.xlu0 %533
    %s536 = sor.u32 256, 80
    %537 = vbcast.lane.b32.xlu0 %v495, %s536
    %v538 = vpop.permute.xlu0 %537
    %s540 = sor.u32 256, 88
    %541 = vbcast.lane.b32.xlu0 %v495, %s540
    %v542 = vpop.permute.xlu0 %541
    %s544 = sor.u32 256, 96
    %545 = vbcast.lane.b32.xlu0 %v495, %s544
    %v546 = vpop.permute.xlu0 %545
    %s548 = sor.u32 256, 104
    %549 = vbcast.lane.b32.xlu0 %v495, %s548
    %v550 = vpop.permute.xlu0 %549
    %s552 = sor.u32 256, 112
    %553 = vbcast.lane.b32.xlu0 %v495, %s552
    %v554 = vpop.permute.xlu0 %553
    %s556 = sor.u32 256, 120
    %557 = vbcast.lane.b32.xlu0 %v495, %s556
    %v558 = vpop.permute.xlu0 %557
    %v559 = vlaneseq
    %v560 = vshrl.u32 %v559, 7
    %v561 = vsub.s32 6, %v560
    %v562 = vrot.slane %v156, %v561
    %564 = vbcast.lane.b32.xlu0 %v562, 256
    %v565 = vpop.permute.xlu0 %564
    %s567 = sor.u32 256, 8
    %568 = vbcast.lane.b32.xlu0 %v562, %s567
    %v569 = vpop.permute.xlu0 %568
    %s571 = sor.u32 256, 16
    %572 = vbcast.lane.b32.xlu0 %v562, %s571
    %v573 = vpop.permute.xlu0 %572
    %s575 = sor.u32 256, 24
    %576 = vbcast.lane.b32.xlu0 %v562, %s575
    %v577 = vpop.permute.xlu0 %576
    %s579 = sor.u32 256, 32
    %580 = vbcast.lane.b32.xlu0 %v562, %s579
    %v581 = vpop.permute.xlu0 %580
    %s583 = sor.u32 256, 40
    %584 = vbcast.lane.b32.xlu0 %v562, %s583
    %v585 = vpop.permute.xlu0 %584
    %s587 = sor.u32 256, 48
    %588 = vbcast.lane.b32.xlu0 %v562, %s587
    %v589 = vpop.permute.xlu0 %588
    %s591 = sor.u32 256, 56
    %592 = vbcast.lane.b32.xlu0 %v562, %s591
    %v593 = vpop.permute.xlu0 %592
    %s595 = sor.u32 256, 64
    %596 = vbcast.lane.b32.xlu0 %v562, %s595
    %v597 = vpop.permute.xlu0 %596
    %s599 = sor.u32 256, 72
    %600 = vbcast.lane.b32.xlu0 %v562, %s599
    %v601 = vpop.permute.xlu0 %600
    %s603 = sor.u32 256, 80
    %604 = vbcast.lane.b32.xlu0 %v562, %s603
    %v605 = vpop.permute.xlu0 %604
    %s607 = sor.u32 256, 88
    %608 = vbcast.lane.b32.xlu0 %v562, %s607
    %v609 = vpop.permute.xlu0 %608
    %s611 = sor.u32 256, 96
    %612 = vbcast.lane.b32.xlu0 %v562, %s611
    %v613 = vpop.permute.xlu0 %612
    %s615 = sor.u32 256, 104
    %616 = vbcast.lane.b32.xlu0 %v562, %s615
    %v617 = vpop.permute.xlu0 %616
    %s619 = sor.u32 256, 112
    %620 = vbcast.lane.b32.xlu0 %v562, %s619
    %v621 = vpop.permute.xlu0 %620
    %s623 = sor.u32 256, 120
    %624 = vbcast.lane.b32.xlu0 %v562, %s623
    %v625 = vpop.permute.xlu0 %624
    %v626 = vlaneseq
    %v627 = vshrl.u32 %v626, 7
    %v628 = vsub.s32 7, %v627
    %v629 = vrot.slane %v156, %v628
    %631 = vbcast.lane.b32.xlu0 %v629, 256
    %v632 = vpop.permute.xlu0 %631
    %s634 = sor.u32 256, 8
    %635 = vbcast.lane.b32.xlu0 %v629, %s634
    %v636 = vpop.permute.xlu0 %635
    %s638 = sor.u32 256, 16
    %639 = vbcast.lane.b32.xlu0 %v629, %s638
    %v640 = vpop.permute.xlu0 %639
    %s642 = sor.u32 256, 24
    %643 = vbcast.lane.b32.xlu0 %v629, %s642
    %v644 = vpop.permute.xlu0 %643
    %s646 = sor.u32 256, 32
    %647 = vbcast.lane.b32.xlu0 %v629, %s646
    %v648 = vpop.permute.xlu0 %647
    %s650 = sor.u32 256, 40
    %651 = vbcast.lane.b32.xlu0 %v629, %s650
    %v652 = vpop.permute.xlu0 %651
    %s654 = sor.u32 256, 48
    %655 = vbcast.lane.b32.xlu0 %v629, %s654
    %v656 = vpop.permute.xlu0 %655
    %s658 = sor.u32 256, 56
    %659 = vbcast.lane.b32.xlu0 %v629, %s658
    %v660 = vpop.permute.xlu0 %659
    %s662 = sor.u32 256, 64
    %663 = vbcast.lane.b32.xlu0 %v629, %s662
    %v664 = vpop.permute.xlu0 %663
    %s666 = sor.u32 256, 72
    %667 = vbcast.lane.b32.xlu0 %v629, %s666
    %v668 = vpop.permute.xlu0 %667
    %s670 = sor.u32 256, 80
    %671 = vbcast.lane.b32.xlu0 %v629, %s670
    %v672 = vpop.permute.xlu0 %671
    %s674 = sor.u32 256, 88
    %675 = vbcast.lane.b32.xlu0 %v629, %s674
    %v676 = vpop.permute.xlu0 %675
    %s678 = sor.u32 256, 96
    %679 = vbcast.lane.b32.xlu0 %v629, %s678
    %v680 = vpop.permute.xlu0 %679
    %s682 = sor.u32 256, 104
    %683 = vbcast.lane.b32.xlu0 %v629, %s682
    %v684 = vpop.permute.xlu0 %683
    %s686 = sor.u32 256, 112
    %687 = vbcast.lane.b32.xlu0 %v629, %s686
    %v688 = vpop.permute.xlu0 %687
    %s690 = sor.u32 256, 120
    %691 = vbcast.lane.b32.xlu0 %v629, %s690
    %v692 = vpop.permute.xlu0 %691
    %v693 = vmul.f32 %v28, %v163
    %v694 = vmul.f32 %v29, %v167
    %v695 = vmul.f32 %v30, %v171
    %v696 = vmul.f32 %v31, %v175
    %v697 = vmul.f32 %v32, %v179
    %v698 = vmul.f32 %v33, %v183
    %v699 = vmul.f32 %v34, %v187
    %v700 = vmul.f32 %v35, %v191
    %v701 = vmul.f32 %v36, %v195
    %v702 = vmul.f32 %v37, %v199
    %v703 = vmul.f32 %v38, %v203
    %v704 = vmul.f32 %v39, %v207
    %v705 = vmul.f32 %v40, %v211
    %v706 = vmul.f32 %v41, %v215
    %v707 = vmul.f32 %v42, %v219
    %v708 = vmul.f32 %v43, %v223
    %v709 = vmul.f32 %v44, %v230
    %v710 = vmul.f32 %v45, %v234
    %v711 = vmul.f32 %v46, %v238
    %v712 = vmul.f32 %v47, %v242
    %v713 = vmul.f32 %v48, %v246
    %v714 = vmul.f32 %v49, %v250
    %v715 = vmul.f32 %v50, %v254
    %v716 = vmul.f32 %v51, %v258
    %v717 = vmul.f32 %v52, %v262
    %v718 = vmul.f32 %v53, %v266
    %v719 = vmul.f32 %v54, %v270
    %v720 = vmul.f32 %v55, %v274
    %v721 = vmul.f32 %v56, %v278
    %v722 = vmul.f32 %v57, %v282
    %v723 = vmul.f32 %v58, %v286
    %v724 = vmul.f32 %v59, %v290
    %v725 = vmul.f32 %v60, %v297
    %v726 = vmul.f32 %v61, %v301
    %v727 = vmul.f32 %v62, %v305
    %v728 = vmul.f32 %v63, %v309
    %v729 = vmul.f32 %v64, %v313
    %v730 = vmul.f32 %v65, %v317
    %v731 = vmul.f32 %v66, %v321
    %v732 = vmul.f32 %v67, %v325
    %v733 = vmul.f32 %v68, %v329
    %v734 = vmul.f32 %v69, %v333
    %v735 = vmul.f32 %v70, %v337
    %v736 = vmul.f32 %v71, %v341
    %v737 = vmul.f32 %v72, %v345
    %v738 = vmul.f32 %v73, %v349
    %v739 = vmul.f32 %v74, %v353
    %v740 = vmul.f32 %v75, %v357
    %v741 = vmul.f32 %v76, %v364
    %v742 = vmul.f32 %v77, %v368
    %v743 = vmul.f32 %v78, %v372
    %v744 = vmul.f32 %v79, %v376
    %v745 = vmul.f32 %v80, %v380
    %v746 = vmul.f32 %v81, %v384
    %v747 = vmul.f32 %v82, %v388
    %v748 = vmul.f32 %v83, %v392
    %v749 = vmul.f32 %v84, %v396
    %v750 = vmul.f32 %v85, %v400
    %v751 = vmul.f32 %v86, %v404
    %v752 = vmul.f32 %v87, %v408
    %v753 = vmul.f32 %v88, %v412
    %v754 = vmul.f32 %v89, %v416
    %v755 = vmul.f32 %v90, %v420
    %v756 = vmul.f32 %v91, %v424
    %v757 = vmul.f32 %v92, %v431
    %v758 = vmul.f32 %v93, %v435
    %v759 = vmul.f32 %v94, %v439
    %v760 = vmul.f32 %v95, %v443
    %v761 = vmul.f32 %v96, %v447
    %v762 = vmul.f32 %v97, %v451
    %v763 = vmul.f32 %v98, %v455
    %v764 = vmul.f32 %v99, %v459
    %v765 = vmul.f32 %v100, %v463
    %v766 = vmul.f32 %v101, %v467
    %v767 = vmul.f32 %v102, %v471
    %v768 = vmul.f32 %v103, %v475
    %v769 = vmul.f32 %v104, %v479
    %v770 = vmul.f32 %v105, %v483
    %v771 = vmul.f32 %v106, %v487
    %v772 = vmul.f32 %v107, %v491
    %v773 = vmul.f32 %v108, %v498
    %v774 = vmul.f32 %v109, %v502
    %v775 = vmul.f32 %v110, %v506
    %v776 = vmul.f32 %v111, %v510
    %v777 = vmul.f32 %v112, %v514
    %v778 = vmul.f32 %v113, %v518
    %v779 = vmul.f32 %v114, %v522
    %v780 = vmul.f32 %v115, %v526
    %v781 = vmul.f32 %v116, %v530
    %v782 = vmul.f32 %v117, %v534
    %v783 = vmul.f32 %v118, %v538
    %v784 = vmul.f32 %v119, %v542
    %v785 = vmul.f32 %v120, %v546
    %v786 = vmul.f32 %v121, %v550
    %v787 = vmul.f32 %v122, %v554
    %v788 = vmul.f32 %v123, %v558
    %v789 = vmul.f32 %v124, %v565
    %v790 = vmul.f32 %v125, %v569
    %v791 = vmul.f32 %v126, %v573
    %v792 = vmul.f32 %v127, %v577
    %v793 = vmul.f32 %v128, %v581
    %v794 = vmul.f32 %v129, %v585
    %v795 = vmul.f32 %v130, %v589
    %v796 = vmul.f32 %v131, %v593
    %v797 = vmul.f32 %v132, %v597
    %v798 = vmul.f32 %v133, %v601
    %v799 = vmul.f32 %v134, %v605
    %v800 = vmul.f32 %v135, %v609
    %v801 = vmul.f32 %v136, %v613
    %v802 = vmul.f32 %v137, %v617
    %v803 = vmul.f32 %v138, %v621
    %v804 = vmul.f32 %v139, %v625
    %v805 = vmul.f32 %v140, %v632
    %v806 = vmul.f32 %v141, %v636
    %v807 = vmul.f32 %v142, %v640
    %v808 = vmul.f32 %v143, %v644
    %v809 = vmul.f32 %v144, %v648
    %v810 = vmul.f32 %v145, %v652
    %v811 = vmul.f32 %v146, %v656
    %v812 = vmul.f32 %v147, %v660
    %v813 = vmul.f32 %v148, %v664
    %v814 = vmul.f32 %v149, %v668
    %v815 = vmul.f32 %v150, %v672
    %v816 = vmul.f32 %v151, %v676
    %v817 = vmul.f32 %v152, %v680
    %v818 = vmul.f32 %v153, %v684
    %v819 = vmul.f32 %v154, %v688
    %v820 = vmul.f32 %v155, %v692
    %v821 = vld [vmem:[#allocation2] sm:$0xff]
    %vm822 = vcmask 261120
    %v823 = vsel %vm822, %v693, 0.0
    %v824 = vsel %vm822, %v694, 0.0
    %v825 = vadd.f32 %v823, %v824
    %v826 = vsel %vm822, %v695, 0.0
    %v827 = vadd.f32 %v825, %v826
    %v828 = vsel %vm822, %v696, 0.0
    %v829 = vadd.f32 %v827, %v828
    %v830 = vsel %vm822, %v697, 0.0
    %v831 = vadd.f32 %v829, %v830
    %v832 = vsel %vm822, %v698, 0.0
    %v833 = vadd.f32 %v831, %v832
    %v834 = vsel %vm822, %v699, 0.0
    %v835 = vadd.f32 %v833, %v834
    %v836 = vsel %vm822, %v700, 0.0
    %v837 = vadd.f32 %v835, %v836
    %v838 = vsel %vm822, %v701, 0.0
    %v839 = vadd.f32 %v837, %v838
    %v840 = vsel %vm822, %v702, 0.0
    %v841 = vadd.f32 %v839, %v840
    %v842 = vsel %vm822, %v703, 0.0
    %v843 = vadd.f32 %v841, %v842
    %v844 = vsel %vm822, %v704, 0.0
    %v845 = vadd.f32 %v843, %v844
    %v846 = vsel %vm822, %v705, 0.0
    %v847 = vadd.f32 %v845, %v846
    %v848 = vsel %vm822, %v706, 0.0
    %v849 = vadd.f32 %v847, %v848
    %v850 = vsel %vm822, %v707, 0.0
    %v851 = vadd.f32 %v849, %v850
    %v852 = vsel %vm822, %v708, 0.0
    %v853 = vadd.f32 %v851, %v852
    %v854 = vrot.slane %v853, 4
    %v855 = vadd.f32 %v853, %v854
    %v856 = vrot.slane %v855, 2
    %v857 = vadd.f32 %v855, %v856
    %v858 = vrot.slane %v857, 1
    %v859 = vadd.f32 %v857, %v858
    %v860 = vsel %vm822, %v709, 0.0
    %v861 = vsel %vm822, %v710, 0.0
    %v862 = vadd.f32 %v860, %v861
    %v863 = vsel %vm822, %v711, 0.0
    %v864 = vadd.f32 %v862, %v863
    %v865 = vsel %vm822, %v712, 0.0
    %v866 = vadd.f32 %v864, %v865
    %v867 = vsel %vm822, %v713, 0.0
    %v868 = vadd.f32 %v866, %v867
    %v869 = vsel %vm822, %v714, 0.0
    %v870 = vadd.f32 %v868, %v869
    %v871 = vsel %vm822, %v715, 0.0
    %v872 = vadd.f32 %v870, %v871
    %v873 = vsel %vm822, %v716, 0.0
    %v874 = vadd.f32 %v872, %v873
    %v875 = vsel %vm822, %v717, 0.0
    %v876 = vadd.f32 %v874, %v875
    %v877 = vsel %vm822, %v718, 0.0
    %v878 = vadd.f32 %v876, %v877
    %v879 = vsel %vm822, %v719, 0.0
    %v880 = vadd.f32 %v878, %v879
    %v881 = vsel %vm822, %v720, 0.0
    %v882 = vadd.f32 %v880, %v881
    %v883 = vsel %vm822, %v721, 0.0
    %v884 = vadd.f32 %v882, %v883
    %v885 = vsel %vm822, %v722, 0.0
    %v886 = vadd.f32 %v884, %v885
    %v887 = vsel %vm822, %v723, 0.0
    %v888 = vadd.f32 %v886, %v887
    %v889 = vsel %vm822, %v724, 0.0
    %v890 = vadd.f32 %v888, %v889
    %v891 = vrot.slane %v890, 4
    %v892 = vadd.f32 %v890, %v891
    %v893 = vrot.slane %v892, 2
    %v894 = vadd.f32 %v892, %v893
    %v895 = vrot.slane %v894, 1
    %v896 = vadd.f32 %v894, %v895
    %v897 = vsel %vm822, %v725, 0.0
    %v898 = vsel %vm822, %v726, 0.0
    %v899 = vadd.f32 %v897, %v898
    %v900 = vsel %vm822, %v727, 0.0
    %v901 = vadd.f32 %v899, %v900
    %v902 = vsel %vm822, %v728, 0.0
    %v903 = vadd.f32 %v901, %v902
    %v904 = vsel %vm822, %v729, 0.0
    %v905 = vadd.f32 %v903, %v904
    %v906 = vsel %vm822, %v730, 0.0
    %v907 = vadd.f32 %v905, %v906
    %v908 = vsel %vm822, %v731, 0.0
    %v909 = vadd.f32 %v907, %v908
    %v910 = vsel %vm822, %v732, 0.0
    %v911 = vadd.f32 %v909, %v910
    %v912 = vsel %vm822, %v733, 0.0
    %v913 = vadd.f32 %v911, %v912
    %v914 = vsel %vm822, %v734, 0.0
    %v915 = vadd.f32 %v913, %v914
    %v916 = vsel %vm822, %v735, 0.0
    %v917 = vadd.f32 %v915, %v916
    %v918 = vsel %vm822, %v736, 0.0
    %v919 = vadd.f32 %v917, %v918
    %v920 = vsel %vm822, %v737, 0.0
    %v921 = vadd.f32 %v919, %v920
    %v922 = vsel %vm822, %v738, 0.0
    %v923 = vadd.f32 %v921, %v922
    %v924 = vsel %vm822, %v739, 0.0
    %v925 = vadd.f32 %v923, %v924
    %v926 = vsel %vm822, %v740, 0.0
    %v927 = vadd.f32 %v925, %v926
    %v928 = vrot.slane %v927, 4
    %v929 = vadd.f32 %v927, %v928
    %v930 = vrot.slane %v929, 2
    %v931 = vadd.f32 %v929, %v930
    %v932 = vrot.slane %v931, 1
    %v933 = vadd.f32 %v931, %v932
    %v934 = vsel %vm822, %v741, 0.0
    %v935 = vsel %vm822, %v742, 0.0
    %v936 = vadd.f32 %v934, %v935
    %v937 = vsel %vm822, %v743, 0.0
    %v938 = vadd.f32 %v936, %v937
    %v939 = vsel %vm822, %v744, 0.0
    %v940 = vadd.f32 %v938, %v939
    %v941 = vsel %vm822, %v745, 0.0
    %v942 = vadd.f32 %v940, %v941
    %v943 = vsel %vm822, %v746, 0.0
    %v944 = vadd.f32 %v942, %v943
    %v945 = vsel %vm822, %v747, 0.0
    %v946 = vadd.f32 %v944, %v945
    %v947 = vsel %vm822, %v748, 0.0
    %v948 = vadd.f32 %v946, %v947
    %v949 = vsel %vm822, %v749, 0.0
    %v950 = vadd.f32 %v948, %v949
    %v951 = vsel %vm822, %v750, 0.0
    %v952 = vadd.f32 %v950, %v951
    %v953 = vsel %vm822, %v751, 0.0
    %v954 = vadd.f32 %v952, %v953
    %v955 = vsel %vm822, %v752, 0.0
    %v956 = vadd.f32 %v954, %v955
    %v957 = vsel %vm822, %v753, 0.0
    %v958 = vadd.f32 %v956, %v957
    %v959 = vsel %vm822, %v754, 0.0
    %v960 = vadd.f32 %v958, %v959
    %v961 = vsel %vm822, %v755, 0.0
    %v962 = vadd.f32 %v960, %v961
    %v963 = vsel %vm822, %v756, 0.0
    %v964 = vadd.f32 %v962, %v963
    %v965 = vrot.slane %v964, 4
    %v966 = vadd.f32 %v964, %v965
    %v967 = vrot.slane %v966, 2
    %v968 = vadd.f32 %v966, %v967
    %v969 = vrot.slane %v968, 1
    %v970 = vadd.f32 %v968, %v969
    %v971 = vsel %vm822, %v757, 0.0
    %v972 = vsel %vm822, %v758, 0.0
    %v973 = vadd.f32 %v971, %v972
    %v974 = vsel %vm822, %v759, 0.0
    %v975 = vadd.f32 %v973, %v974
    %v976 = vsel %vm822, %v760, 0.0
    %v977 = vadd.f32 %v975, %v976
    %v978 = vsel %vm822, %v761, 0.0
    %v979 = vadd.f32 %v977, %v978
    %v980 = vsel %vm822, %v762, 0.0
    %v981 = vadd.f32 %v979, %v980
    %v982 = vsel %vm822, %v763, 0.0
    %v983 = vadd.f32 %v981, %v982
    %v984 = vsel %vm822, %v764, 0.0
    %v985 = vadd.f32 %v983, %v984
    %v986 = vsel %vm822, %v765, 0.0
    %v987 = vadd.f32 %v985, %v986
    %v988 = vsel %vm822, %v766, 0.0
    %v989 = vadd.f32 %v987, %v988
    %v990 = vsel %vm822, %v767, 0.0
    %v991 = vadd.f32 %v989, %v990
    %v992 = vsel %vm822, %v768, 0.0
    %v993 = vadd.f32 %v991, %v992
    %v994 = vsel %vm822, %v769, 0.0
    %v995 = vadd.f32 %v993, %v994
    %v996 = vsel %vm822, %v770, 0.0
    %v997 = vadd.f32 %v995, %v996
    %v998 = vsel %vm822, %v771, 0.0
    %v999 = vadd.f32 %v997, %v998
    %v1000 = vsel %vm822, %v772, 0.0
    %v1001 = vadd.f32 %v999, %v1000
    %v1002 = vrot.slane %v1001, 4
    %v1003 = vadd.f32 %v1001, %v1002
    %v1004 = vrot.slane %v1003, 2
    %v1005 = vadd.f32 %v1003, %v1004
    %v1006 = vrot.slane %v1005, 1
    %v1007 = vadd.f32 %v1005, %v1006
    %v1008 = vsel %vm822, %v773, 0.0
    %v1009 = vsel %vm822, %v774, 0.0
    %v1010 = vadd.f32 %v1008, %v1009
    %v1011 = vsel %vm822, %v775, 0.0
    %v1012 = vadd.f32 %v1010, %v1011
    %v1013 = vsel %vm822, %v776, 0.0
    %v1014 = vadd.f32 %v1012, %v1013
    %v1015 = vsel %vm822, %v777, 0.0
    %v1016 = vadd.f32 %v1014, %v1015
    %v1017 = vsel %vm822, %v778, 0.0
    %v1018 = vadd.f32 %v1016, %v1017
    %v1019 = vsel %vm822, %v779, 0.0
    %v1020 = vadd.f32 %v1018, %v1019
    %v1021 = vsel %vm822, %v780, 0.0
    %v1022 = vadd.f32 %v1020, %v1021
    %v1023 = vsel %vm822, %v781, 0.0
    %v1024 = vadd.f32 %v1022, %v1023
    %v1025 = vsel %vm822, %v782, 0.0
    %v1026 = vadd.f32 %v1024, %v1025
    %v1027 = vsel %vm822, %v783, 0.0
    %v1028 = vadd.f32 %v1026, %v1027
    %v1029 = vsel %vm822, %v784, 0.0
    %v1030 = vadd.f32 %v1028, %v1029
    %v1031 = vsel %vm822, %v785, 0.0
    %v1032 = vadd.f32 %v1030, %v1031
    %v1033 = vsel %vm822, %v786, 0.0
    %v1034 = vadd.f32 %v1032, %v1033
    %v1035 = vsel %vm822, %v787, 0.0
    %v1036 = vadd.f32 %v1034, %v1035
    %v1037 = vsel %vm822, %v788, 0.0
    %v1038 = vadd.f32 %v1036, %v1037
    %v1039 = vrot.slane %v1038, 4
    %v1040 = vadd.f32 %v1038, %v1039
    %v1041 = vrot.slane %v1040, 2
    %v1042 = vadd.f32 %v1040, %v1041
    %v1043 = vrot.slane %v1042, 1
    %v1044 = vadd.f32 %v1042, %v1043
    %v1045 = vsel %vm822, %v789, 0.0
    %v1046 = vsel %vm822, %v790, 0.0
    %v1047 = vadd.f32 %v1045, %v1046
    %v1048 = vsel %vm822, %v791, 0.0
    %v1049 = vadd.f32 %v1047, %v1048
    %v1050 = vsel %vm822, %v792, 0.0
    %v1051 = vadd.f32 %v1049, %v1050
    %v1052 = vsel %vm822, %v793, 0.0
    %v1053 = vadd.f32 %v1051, %v1052
    %v1054 = vsel %vm822, %v794, 0.0
    %v1055 = vadd.f32 %v1053, %v1054
    %v1056 = vsel %vm822, %v795, 0.0
    %v1057 = vadd.f32 %v1055, %v1056
    %v1058 = vsel %vm822, %v796, 0.0
    %v1059 = vadd.f32 %v1057, %v1058
    %v1060 = vsel %vm822, %v797, 0.0
    %v1061 = vadd.f32 %v1059, %v1060
    %v1062 = vsel %vm822, %v798, 0.0
    %v1063 = vadd.f32 %v1061, %v1062
    %v1064 = vsel %vm822, %v799, 0.0
    %v1065 = vadd.f32 %v1063, %v1064
    %v1066 = vsel %vm822, %v800, 0.0
    %v1067 = vadd.f32 %v1065, %v1066
    %v1068 = vsel %vm822, %v801, 0.0
    %v1069 = vadd.f32 %v1067, %v1068
    %v1070 = vsel %vm822, %v802, 0.0
    %v1071 = vadd.f32 %v1069, %v1070
    %v1072 = vsel %vm822, %v803, 0.0
    %v1073 = vadd.f32 %v1071, %v1072
    %v1074 = vsel %vm822, %v804, 0.0
    %v1075 = vadd.f32 %v1073, %v1074
    %v1076 = vrot.slane %v1075, 4
    %v1077 = vadd.f32 %v1075, %v1076
    %v1078 = vrot.slane %v1077, 2
    %v1079 = vadd.f32 %v1077, %v1078
    %v1080 = vrot.slane %v1079, 1
    %v1081 = vadd.f32 %v1079, %v1080
    %v1082 = vsel %vm822, %v805, 0.0
    %v1083 = vsel %vm822, %v806, 0.0
    %v1084 = vadd.f32 %v1082, %v1083
    %v1085 = vsel %vm822, %v807, 0.0
    %v1086 = vadd.f32 %v1084, %v1085
    %v1087 = vsel %vm822, %v808, 0.0
    %v1088 = vadd.f32 %v1086, %v1087
    %v1089 = vsel %vm822, %v809, 0.0
    %v1090 = vadd.f32 %v1088, %v1089
    %v1091 = vsel %vm822, %v810, 0.0
    %v1092 = vadd.f32 %v1090, %v1091
    %v1093 = vsel %vm822, %v811, 0.0
    %v1094 = vadd.f32 %v1092, %v1093
    %v1095 = vsel %vm822, %v812, 0.0
    %v1096 = vadd.f32 %v1094, %v1095
    %v1097 = vsel %vm822, %v813, 0.0
    %v1098 = vadd.f32 %v1096, %v1097
    %v1099 = vsel %vm822, %v814, 0.0
    %v1100 = vadd.f32 %v1098, %v1099
    %v1101 = vsel %vm822, %v815, 0.0
    %v1102 = vadd.f32 %v1100, %v1101
    %v1103 = vsel %vm822, %v816, 0.0
    %v1104 = vadd.f32 %v1102, %v1103
    %v1105 = vsel %vm822, %v817, 0.0
    %v1106 = vadd.f32 %v1104, %v1105
    %v1107 = vsel %vm822, %v818, 0.0
    %v1108 = vadd.f32 %v1106, %v1107
    %v1109 = vsel %vm822, %v819, 0.0
    %v1110 = vadd.f32 %v1108, %v1109
    %v1111 = vsel %vm822, %v820, 0.0
    %v1112 = vadd.f32 %v1110, %v1111
    %v1113 = vrot.slane %v1112, 4
    %v1114 = vadd.f32 %v1112, %v1113
    %v1115 = vrot.slane %v1114, 2
    %v1116 = vadd.f32 %v1114, %v1115
    %v1117 = vrot.slane %v1116, 1
    %v1118 = vadd.f32 %v1116, %v1117
    %vm1127 = vcmask 1041409
    %v1128 = vsel %vm1127, %v896, %v859
    %vm1129 = vcmask 1042434
    %v1130 = vsel %vm1129, %v933, %v1128
    %vm1131 = vcmask 1043459
    %v1132 = vsel %vm1131, %v970, %v1130
    %vm1133 = vcmask 1044484
    %v1134 = vsel %vm1133, %v1007, %v1132
    %vm1135 = vcmask 1045509
    %v1136 = vsel %vm1135, %v1044, %v1134
    %vm1137 = vcmask 1046534
    %v1138 = vsel %vm1137, %v1081, %v1136
    %vm1139 = vcmask 1047559
    %v1140 = vsel %vm1139, %v1118, %v1138
    %v1142 = vadd.f32 %v821, %v1140
    %1143 = vst.msk [vmem:[#allocation2] sm:$0xff] %vm822, %v1142
    %v1144 = vld [vmem:[#allocation3] sm:$0xff]
    %1145 = vadd.xlane.f32.xlu0 %v156
    %v1146 = vpop.xlane.xlu0 %1145
    %v1147 = vadd.f32 %v1144, %v1146
    %vm1148 = vcmask 7168
    %1149 = vst.msk [vmem:[#allocation3] sm:$0xff] %vm1148, %v1147
    // Predicated region
    $region22: #{tpu_custom_call.1} parent=1 // pred_check
      %p1150 = pneg %p20
    $region23: #{tpu_custom_call.1} parent=1 // pred_check_branch
      %1152 = sbr.rel (%p1150) target = $region25
    $region24: #{tpu_custom_call.1} parent=1 // pred_region
      %v1153 = vld [vmem:[#allocation2] sm:$0xff]
      %v1154 = vld [vmem:[#allocation3] sm:$0xff]
      %1156 = vset.pattern.permute.xlu0 0
      %1157 = vperm.xlu0 %1156, %v1154
      %v1158 = vpop.permute.xlu0 %1157
      %v1160 = vrcp.pop %v1158
      %v1161 = vmul.f32 %v1153, %v1160
      %v1162 = vld [vmem:[%s2] sm:$0xff]
      %v1163 = vld [vmem:[%s2 + $0x8] sm:$0xff]
      %v1164 = vld [vmem:[%s2 + $0x10] sm:$0xff]
      %v1165 = vld [vmem:[%s2 + $0x18] sm:$0xff]
      %v1166 = vld [vmem:[%s3] sm:$0x1]
      %v1168 = vlaneseq
      %v1169 = vshrl.u32 %v1168, 7
      %v1170 = vsub.s32 0, %v1169
      %v1171 = vrot.slane %v1166, %v1170
      %v1174 = vsel %vm822, %v1161, 0
      %1176 = vmatprep.subr.mxu0 0.0
      %1177 = vmatpush1.msra.mxu0 %v1162
      %1178 = vmatprep.subr.mxu0 0.0
      %1179 = vmatpush1.msra.mxu0 %v1163
      %1180 = vmatprep.subr.mxu0 0.0
      %1181 = vmatpush1.msra.mxu0 %v1164
      %1182 = vmatprep.subr.mxu0 0.0
      %1183 = vmatpush1.msra.mxu0 %v1165
      %1184 = vmatprep.subr.mxu0 0.0
      %1185 = vmatpush1.msra.mxu0 0.0
      %1186 = vmatprep.subr.mxu0 0.0
      %1187 = vmatpush1.msra.mxu0 0.0
      %1188 = vmatprep.subr.mxu0 0.0
      %1189 = vmatpush1.msra.mxu0 0.0
      %1190 = vmatprep.subr.mxu0 0.0
      %1191 = vmatpush1.msra.mxu0 0.0
      %1192 = vmatprep.subr.mxu0 0.0
      %1193 = vmatpush1.msra.mxu0 0.0
      %1194 = vmatprep.subr.mxu0 0.0
      %1195 = vmatpush1.msra.mxu0 0.0
      %1196 = vmatprep.subr.mxu0 0.0
      %1197 = vmatpush1.msra.mxu0 0.0
      %1198 = vmatprep.subr.mxu0 0.0
      %1199 = vmatpush1.msra.mxu0 0.0
      %1200 = vmatprep.subr.mxu0 0.0
      %1201 = vmatpush1.msra.mxu0 0.0
      %1202 = vmatprep.subr.mxu0 0.0
      %1203 = vmatpush1.msra.mxu0 0.0
      %1204 = vmatprep.subr.mxu0 0.0
      %1205 = vmatpush1.msra.mxu0 0.0
      %1206 = vmatprep.subr.mxu0 0.0
      %1207 = vmatpush1.msra.mxu0 0.0
      %1208 = vmatprep.subr.mxu0 0.0
      %1209 = vmatpush1.msra.mxu0 0.0
      %1210 = vmatprep.subr.mxu0 0.0
      %1211 = vmatpush1.msra.mxu0 0.0
      %1212 = vmatprep.subr.mxu0 0.0
      %1213 = vmatpush1.msra.mxu0 0.0
      %1214 = vmatprep.subr.mxu0 0.0
      %1215 = vmatpush1.msra.mxu0 0.0
      %1216 = vmatprep.subr.mxu0 0.0
      %1217 = vmatpush1.msra.mxu0 0.0
      %1218 = vmatprep.subr.mxu0 0.0
      %1219 = vmatpush1.msra.mxu0 0.0
      %1220 = vmatprep.subr.mxu0 0.0
      %1221 = vmatpush1.msra.mxu0 0.0
      %1222 = vmatprep.subr.mxu0 0.0
      %1223 = vmatpush1.msra.mxu0 0.0
      %1224 = vmatprep.subr.mxu0 0.0
      %1225 = vmatpush1.msra.mxu0 0.0
      %1226 = vmatprep.subr.mxu0 0.0
      %1227 = vmatpush1.msra.mxu0 0.0
      %1228 = vmatprep.subr.mxu0 0.0
      %1229 = vmatpush1.msra.mxu0 0.0
      %1230 = vmatprep.subr.mxu0 0.0
      %1231 = vmatpush1.msra.mxu0 0.0
      %1232 = vmatprep.subr.mxu0 0.0
      %1233 = vmatpush1.msra.mxu0 0.0
      %1234 = vmatprep.subr.mxu0 0.0
      %1235 = vmatpush1.msra.mxu0 0.0
      %1236 = vmatprep.subr.mxu0 0.0
      %1237 = vmatpush1.msra.mxu0 0.0
      %1238 = vmatprep.subr.mxu0 0.0
      %1239 = vmatpush1.msra.mxu0 0.0
      %1240 = vmatprep.mubr.f32.mxu0 0.0
      %1241 = vmatmul.mubr.f32.gmra.mrb[0].mxu0 %v1174
      %v1242 = vpop.f32.mrb[0].mxu0
      %v1243 = vadd.f32 %v1171, %v1242
      %v1244 = vpop.f32.mrb[0].mxu0
      %1245 = vdwg.mxu0
      %v1246 = vmax.f32 %v1243, 0.0
      %1247 = vst.msk [vmem:[#allocation4] sm:$0xff] %vm822, %v1243
      %v1249 = vcombine.high %v1246, %v1246
      %v1251 = vunpack.c.l.s4 1966171168
      %v1252 = vunpack.c.0.s8 %v1251
      %v1253 = vlaneseq
      %v1254 = vshrl.u32 %v1253, 7
      %v1255 = vsub.s32 %v1252, %v1254
      %v1256 = vrot.slane %v1246, %v1255
      %v1258 = vunpack.c.l.s4 1966171168
      %v1259 = vunpack.c.0.s8 %v1258
      %v1260 = vlaneseq
      %v1261 = vshrl.u32 %v1260, 7
      %v1262 = vsub.s32 %v1259, %v1261
      %v1263 = vrot.slane %v1249, %v1262
      %v1264 = vcombine.high %v1256, %v1256
      %v1265 = vcombine.high %v1263, %v1263
      %v1267 = vunpack.c.l.s4 1966171168
      %v1268 = vunpack.c.0.s8 %v1267
      %v1269 = vlaneseq
      %v1270 = vshrl.u32 %v1269, 7
      %v1271 = vsub.s32 %v1268, %v1270
      %v1272 = vrot.slane %v1256, %v1271
      %v1274 = vunpack.c.l.s4 1966171168
      %v1275 = vunpack.c.0.s8 %v1274
      %v1276 = vlaneseq
      %v1277 = vshrl.u32 %v1276, 7
      %v1278 = vsub.s32 %v1275, %v1277
      %v1279 = vrot.slane %v1263, %v1278
      %v1281 = vunpack.c.l.s4 1966171168
      %v1282 = vunpack.c.0.s8 %v1281
      %v1283 = vlaneseq
      %v1284 = vshrl.u32 %v1283, 7
      %v1285 = vsub.s32 %v1282, %v1284
      %v1286 = vrot.slane %v1264, %v1285
      %v1288 = vunpack.c.l.s4 1966171168
      %v1289 = vunpack.c.0.s8 %v1288
      %v1290 = vlaneseq
      %v1291 = vshrl.u32 %v1290, 7
      %v1292 = vsub.s32 %v1289, %v1291
      %v1293 = vrot.slane %v1265, %v1292
      %v1294 = vcombine.high %v1272, %v1272
      %v1295 = vcombine.high %v1279, %v1279
      %v1296 = vcombine.high %v1286, %v1286
      %v1297 = vcombine.high %v1293, %v1293
      %v1298 = vlaneseq
      %v1299 = vshrl.u32 %v1298, 7
      %v1300 = vsub.s32 0, %v1299
      %v1301 = vrot.slane %v1272, %v1300
      %v1302 = vlaneseq
      %v1303 = vshrl.u32 %v1302, 7
      %v1304 = vsub.s32 0, %v1303
      %v1305 = vrot.slane %v1286, %v1304
      %v1306 = vlaneseq
      %v1307 = vshrl.u32 %v1306, 7
      %v1308 = vsub.s32 0, %v1307
      %v1309 = vrot.slane %v1294, %v1308
      %v1310 = vlaneseq
      %v1311 = vshrl.u32 %v1310, 7
      %v1312 = vsub.s32 0, %v1311
      %v1313 = vrot.slane %v1296, %v1312
      %v1314 = vlaneseq
      %v1315 = vshrl.u32 %v1314, 7
      %v1316 = vsub.s32 0, %v1315
      %v1317 = vrot.slane %v1279, %v1316
      %v1318 = vlaneseq
      %v1319 = vshrl.u32 %v1318, 7
      %v1320 = vsub.s32 0, %v1319
      %v1321 = vrot.slane %v1293, %v1320
      %v1322 = vlaneseq
      %v1323 = vshrl.u32 %v1322, 7
      %v1324 = vsub.s32 0, %v1323
      %v1325 = vrot.slane %v1295, %v1324
      %v1326 = vlaneseq
      %v1327 = vshrl.u32 %v1326, 7
      %v1328 = vsub.s32 0, %v1327
      %v1329 = vrot.slane %v1297, %v1328
      %vm1338 = vcmask 254976
      %1339 = vst.msk [vmem:[%s5] sm:$0x3] %vm1338, %v1301
      %1340 = vst.msk [vmem:[%s5 + $0x4] sm:$0x3] %vm1338, %v1305
      %1341 = vst.msk [vmem:[%s5 + $0x8] sm:$0x3] %vm1338, %v1309
      %1342 = vst.msk [vmem:[%s5 + $0xc] sm:$0x3] %vm1338, %v1313
      %1343 = vst.msk [vmem:[%s5 + $0x10] sm:$0x3] %vm1338, %v1317
      %1344 = vst.msk [vmem:[%s5 + $0x14] sm:$0x3] %vm1338, %v1321
      %1345 = vst.msk [vmem:[%s5 + $0x18] sm:$0x3] %vm1338, %v1325
      %1346 = vst.msk [vmem:[%s5 + $0x1c] sm:$0x3] %vm1338, %v1329
      %v1348 = vcombine.high %v1243, %v1243
      %v1350 = vunpack.c.l.s4 1966171168
      %v1351 = vunpack.c.0.s8 %v1350
      %v1352 = vlaneseq
      %v1353 = vshrl.u32 %v1352, 7
      %v1354 = vsub.s32 %v1351, %v1353
      %v1355 = vrot.slane %v1243, %v1354
      %v1357 = vunpack.c.l.s4 1966171168
      %v1358 = vunpack.c.0.s8 %v1357
      %v1359 = vlaneseq
      %v1360 = vshrl.u32 %v1359, 7
      %v1361 = vsub.s32 %v1358, %v1360
      %v1362 = vrot.slane %v1348, %v1361
      %v1363 = vcombine.high %v1355, %v1355
      %v1364 = vcombine.high %v1362, %v1362
      %v1366 = vunpack.c.l.s4 1966171168
      %v1367 = vunpack.c.0.s8 %v1366
      %v1368 = vlaneseq
      %v1369 = vshrl.u32 %v1368, 7
      %v1370 = vsub.s32 %v1367, %v1369
      %v1371 = vrot.slane %v1355, %v1370
      %v1373 = vunpack.c.l.s4 1966171168
      %v1374 = vunpack.c.0.s8 %v1373
      %v1375 = vlaneseq
      %v1376 = vshrl.u32 %v1375, 7
      %v1377 = vsub.s32 %v1374, %v1376
      %v1378 = vrot.slane %v1362, %v1377
      %v1380 = vunpack.c.l.s4 1966171168
      %v1381 = vunpack.c.0.s8 %v1380
      %v1382 = vlaneseq
      %v1383 = vshrl.u32 %v1382, 7
      %v1384 = vsub.s32 %v1381, %v1383
      %v1385 = vrot.slane %v1363, %v1384
      %v1387 = vunpack.c.l.s4 1966171168
      %v1388 = vunpack.c.0.s8 %v1387
      %v1389 = vlaneseq
      %v1390 = vshrl.u32 %v1389, 7
      %v1391 = vsub.s32 %v1388, %v1390
      %v1392 = vrot.slane %v1364, %v1391
      %v1393 = vcombine.high %v1371, %v1371
      %v1394 = vcombine.high %v1378, %v1378
      %v1395 = vcombine.high %v1385, %v1385
      %v1396 = vcombine.high %v1392, %v1392
      %vm1405 = vcmask 253952
      %1406 = vst.msk [vmem:[%s5 + $0x2] sm:$0x1] %vm1405, %v1371
      %1407 = vst.msk [vmem:[%s5 + $0x6] sm:$0x1] %vm1405, %v1385
      %1408 = vst.msk [vmem:[%s5 + $0xa] sm:$0x1] %vm1405, %v1393
      %1409 = vst.msk [vmem:[%s5 + $0xe] sm:$0x1] %vm1405, %v1395
      %1410 = vst.msk [vmem:[%s5 + $0x12] sm:$0x1] %vm1405, %v1378
      %1411 = vst.msk [vmem:[%s5 + $0x16] sm:$0x1] %vm1405, %v1392
      %1412 = vst.msk [vmem:[%s5 + $0x1a] sm:$0x1] %vm1405, %v1394
      %1413 = vst.msk [vmem:[%s5 + $0x1e] sm:$0x1] %vm1405, %v1396
    $region25: #{tpu_custom_call.1} parent=1 // pred_fallthru
      _
    // Predicated region
    $region26: #{tpu_custom_call.1} parent=1 // pred_check
      _
    $region27: #{tpu_custom_call.1} parent=1 // pred_check_branch
      %1415 = sbr.rel (0) target = $region29
    $region28: #{tpu_custom_call.1} parent=1 // pred_region
      %s1417 = ssub.s32 128, 128
      %1418 = vsyncadd [#allocation5], %s1417
      %s1420 = sshll.u32 [#allocation4], 4
      %s1421 = int_to_ptr.vmem [resolvable:$true] %s1420
      %1423 = dma.vmem_to_hbm [thread:$0]  %s1421, 128, %s4, [#allocation5]
    $region29: #{tpu_custom_call.1} parent=1 // pred_fallthru
      _
    // Predicated region
    $region30: #{tpu_custom_call.1} parent=1 // pred_check
      _
    $region31: #{tpu_custom_call.1} parent=1 // pred_check_branch
      %1425 = sbr.rel (0) target = $region33
    $region32: #{tpu_custom_call.1} parent=1 // pred_region
      _
    $region33: #{tpu_custom_call.1} parent=1 // pred_fallthru
      _
    // Predicated region
    $region34: #{tpu_custom_call.1} parent=1 // pred_check
      _
    $region35: #{tpu_custom_call.1} parent=1 // pred_check_branch
      %1427 = sbr.rel (0) target = $region37
    $region36: #{tpu_custom_call.1} parent=1 // pred_region
      %1428 = dma.done [#allocation5], 128
    $region37: #{tpu_custom_call.1} parent=1 // pred_fallthru
      _
    // Predicated region
    $region38: #{tpu_custom_call.1} parent=1 // pred_check
      _
    $region39: #{tpu_custom_call.1} parent=1 // pred_check_branch
      %1430 = sbr.rel (0) target = $region41
    $region40: #{tpu_custom_call.1} parent=1 // pred_region
      _
    $region41: #{tpu_custom_call.1} parent=1 // pred_fallthru
      _
    %1431 = vsyncpa [#allocation5], 1

// kernel: tpu_custom_call.1
$region0: #{tpu_custom_call.1}
  #allocation0 [shape = 'u32[]', space=smem, size = 0x4, offset = 0x4, fixed_abs, tag = 'smem constant byte address 0x4 - core index']
  #allocation1 [shape = 'u32[144,128]{1,0:T(1,128)}', space=vmem, size = 0x12000, scoped, tag = 'internal scratch']
  #allocation2 [shape = 'f32[8,32]{1,0:T(8,128)}', space=vmem, size = 0x1000, scoped, tag = 'scratch operand']
  #allocation3 [shape = 'f32[8,1]{1,0:T(8,128)}', space=vmem, size = 0x1000, scoped, tag = 'scratch operand']
  %s0 = inlined_call_operand.vmem [shape: f32[8,128,32], index: 0, kind: input, shape index: {}]
  %s1 = inlined_call_operand.vmem [shape: f32[8,128], index: 1, kind: input, shape index: {}]
  %s2 = inlined_call_operand.vmem [shape: f32[32,32], index: 2, kind: input, shape index: {}]
  %s3 = inlined_call_operand.vmem [shape: f32[1,32], index: 3, kind: input, shape index: {}]
  %s4 = inlined_call_operand.hbm [shape: f32[8,32], index: 4, kind: output, shape index: {0}]
  %s5 = inlined_call_operand.vmem [shape: f32[8,3,32], index: 5, kind: output, shape index: {1}]
  %6 = xla_tuple %s4, %s5
  %s7 = sld [smem:[#allocation0]]
  $region42: #{tpu_custom_call.1} parent=0
    _
  %s9 = ssub.s32 1, %s7
  %s10 = scalar_select 0, %s9, %s7
  $region1: #{tpu_custom_call.1} parent=0
    #allocation4 [shape = 'u8[4096]{0}', space=vmem, size = 0x1000, scoped, tag = 'output window, operand 0, single buffered']
    #allocation5 [shape = 's32[1]{0}', space=sflag, size = 0x4, scoped, tag = 'scoped memory for tpu_custom_call.1']
    %11 = vsyncpa [#allocation5], 0
    // Predicated region
    $region2: #{tpu_custom_call.1} parent=1 // pred_check
      _
    $region3: #{tpu_custom_call.1} parent=1 // pred_check_branch
      %13 = sbr.rel (0) target = $region5
    $region4: #{tpu_custom_call.1} parent=1 // pred_region
      _
    $region5: #{tpu_custom_call.1} parent=1 // pred_fallthru
      _
    // Predicated region
    $region6: #{tpu_custom_call.1} parent=1 // pred_check
      _
    $region7: #{tpu_custom_call.1} parent=1 // pred_check_branch
      %15 = sbr.rel (0) target = $region9
    $region8: #{tpu_custom_call.1} parent=1 // pred_region
      _
    $region9: #{tpu_custom_call.1} parent=1 // pred_fallthru
      _
    // Predicated region
    $region10: #{tpu_custom_call.1} parent=1 // pred_check
      _
    $region11: #{tpu_custom_call.1} parent=1 // pred_check_branch
      %17 = sbr.rel (0) target = $region13
    $region12: #{tpu_custom_call.1} parent=1 // pred_region
      _
    $region13: #{tpu_custom_call.1} parent=1 // pred_fallthru
      _
    // Predicated region
    $region14: #{tpu_custom_call.1} parent=1 // pred_check
      _
    $region15: #{tpu_custom_call.1} parent=1 // pred_check_branch
      %19 = sbr.rel (0) target = $region17
    $region16: #{tpu_custom_call.1} parent=1 // pred_region
      _
    $region17: #{tpu_custom_call.1} parent=1 // pred_fallthru
      _
    %p20 = scmp.eq.s32.totalorder 0, 0
    // Predicated region
    $region18: #{tpu_custom_call.1} parent=1 // pred_check
      %p21 = pneg %p20
    $region19: #{tpu_custom_call.1} parent=1 // pred_check_branch
      %23 = sbr.rel (%p21) target = $region21
    $region20: #{tpu_custom_call.1} parent=1 // pred_region
      %vm24 = vcmask 261120
      %25 = vst.msk [vmem:[#allocation2] sm:$0xff] %vm24, 0.0
      %vm26 = vcmask 7168
      %27 = vst.msk [vmem:[#allocation3] sm:$0xff] %vm26, 0.0
    $region21: #{tpu_custom_call.1} parent=1 // pred_fallthru
      _
    %v28 = vld [vmem:[%s0] sm:$0xff]
    %v29 = vld [vmem:[%s0 + $0x8] sm:$0xff]
    %v30 = vld [vmem:[%s0 + $0x10] sm:$0xff]
    %v31 = vld [vmem:[%s0 + $0x18] sm:$0xff]
    %v32 = vld [vmem:[%s0 + $0x20] sm:$0xff]
    %v33 = vld [vmem:[%s0 + $0x28] sm:$0xff]
    %v34 = vld [vmem:[%s0 + $0x30] sm:$0xff]
    %v35 = vld [vmem:[%s0 + $0x38] sm:$0xff]
    %v36 = vld [vmem:[%s0 + $0x40] sm:$0xff]
    %v37 = vld [vmem:[%s0 + $0x48] sm:$0xff]
    %v38 = vld [vmem:[%s0 + $0x50] sm:$0xff]
    %v39 = vld [vmem:[%s0 + $0x58] sm:$0xff]
    %v40 = vld [vmem:[%s0 + $0x60] sm:$0xff]
    %v41 = vld [vmem:[%s0 + $0x68] sm:$0xff]
    %v42 = vld [vmem:[%s0 + $0x70] sm:$0xff]
    %v43 = vld [vmem:[%s0 + $0x78] sm:$0xff]
    %v44 = vld [vmem:[%s0 + $0x80] sm:$0xff]
    %v45 = vld [vmem:[%s0 + $0x88] sm:$0xff]
    %v46 = vld [vmem:[%s0 + $0x90] sm:$0xff]
    %v47 = vld [vmem:[%s0 + $0x98] sm:$0xff]
    %v48 = vld [vmem:[%s0 + $0xa0] sm:$0xff]
    %v49 = vld [vmem:[%s0 + $0xa8] sm:$0xff]
    %v50 = vld [vmem:[%s0 + $0xb0] sm:$0xff]
    %v51 = vld [vmem:[%s0 + $0xb8] sm:$0xff]
    %v52 = vld [vmem:[%s0 + $0xc0] sm:$0xff]
    %v53 = vld [vmem:[%s0 + $0xc8] sm:$0xff]
    %v54 = vld [vmem:[%s0 + $0xd0] sm:$0xff]
    %v55 = vld [vmem:[%s0 + $0xd8] sm:$0xff]
    %v56 = vld [vmem:[%s0 + $0xe0] sm:$0xff]
    %v57 = vld [vmem:[%s0 + $0xe8] sm:$0xff]
    %v58 = vld [vmem:[%s0 + $0xf0] sm:$0xff]
    %v59 = vld [vmem:[%s0 + $0xf8] sm:$0xff]
    %v60 = vld [vmem:[%s0 + $0x100] sm:$0xff]
    %v61 = vld [vmem:[%s0 + $0x108] sm:$0xff]
    %v62 = vld [vmem:[%s0 + $0x110] sm:$0xff]
    %v63 = vld [vmem:[%s0 + $0x118] sm:$0xff]
    %v64 = vld [vmem:[%s0 + $0x120] sm:$0xff]
    %v65 = vld [vmem:[%s0 + $0x128] sm:$0xff]
    %v66 = vld [vmem:[%s0 + $0x130] sm:$0xff]
    %v67 = vld [vmem:[%s0 + $0x138] sm:$0xff]
    %v68 = vld [vmem:[%s0 + $0x140] sm:$0xff]
    %v69 = vld [vmem:[%s0 + $0x148] sm:$0xff]
    %v70 = vld [vmem:[%s0 + $0x150] sm:$0xff]
    %v71 = vld [vmem:[%s0 + $0x158] sm:$0xff]
    %v72 = vld [vmem:[%s0 + $0x160] sm:$0xff]
    %v73 = vld [vmem:[%s0 + $0x168] sm:$0xff]
    %v74 = vld [vmem:[%s0 + $0x170] sm:$0xff]
    %v75 = vld [vmem:[%s0 + $0x178] sm:$0xff]
    %v76 = vld [vmem:[%s0 + $0x180] sm:$0xff]
    %v77 = vld [vmem:[%s0 + $0x188] sm:$0xff]
    %v78 = vld [vmem:[%s0 + $0x190] sm:$0xff]
    %v79 = vld [vmem:[%s0 + $0x198] sm:$0xff]
    %v80 = vld [vmem:[%s0 + $0x1a0] sm:$0xff]
    %v81 = vld [vmem:[%s0 + $0x1a8] sm:$0xff]
    %v82 = vld [vmem:[%s0 + $0x1b0] sm:$0xff]
    %v83 = vld [vmem:[%s0 + $0x1b8] sm:$0xff]
    %v84 = vld [vmem:[%s0 + $0x1c0] sm:$0xff]
    %v85 = vld [vmem:[%s0 + $0x1c8] sm:$0xff]
    %v86 = vld [vmem:[%s0 + $0x1d0] sm:$0xff]
    %v87 = vld [vmem:[%s0 + $0x1d8] sm:$0xff]
    %v88 = vld [vmem:[%s0 + $0x1e0] sm:$0xff]
    %v89 = vld [vmem:[%s0 + $0x1e8] sm:$0xff]
    %v90 = vld [vmem:[%s0 + $0x1f0] sm:$0xff]
    %v91 = vld [vmem:[%s0 + $0x1f8] sm:$0xff]
    %v92 = vld [vmem:[%s0 + $0x200] sm:$0xff]
    %v93 = vld [vmem:[%s0 + $0x208] sm:$0xff]
    %v94 = vld [vmem:[%s0 + $0x210] sm:$0xff]
    %v95 = vld [vmem:[%s0 + $0x218] sm:$0xff]
    %v96 = vld [vmem:[%s0 + $0x220] sm:$0xff]
    %v97 = vld [vmem:[%s0 + $0x228] sm:$0xff]
    %v98 = vld [vmem:[%s0 + $0x230] sm:$0xff]
    %v99 = vld [vmem:[%s0 + $0x238] sm:$0xff]
    %v100 = vld [vmem:[%s0 + $0x240] sm:$0xff]
    %v101 = vld [vmem:[%s0 + $0x248] sm:$0xff]
    %v102 = vld [vmem:[%s0 + $0x250] sm:$0xff]
    %v103 = vld [vmem:[%s0 + $0x258] sm:$0xff]
    %v104 = vld [vmem:[%s0 + $0x260] sm:$0xff]
    %v105 = vld [vmem:[%s0 + $0x268] sm:$0xff]
    %v106 = vld [vmem:[%s0 + $0x270] sm:$0xff]
    %v107 = vld [vmem:[%s0 + $0x278] sm:$0xff]
    %v108 = vld [vmem:[%s0 + $0x280] sm:$0xff]
    %v109 = vld [vmem:[%s0 + $0x288] sm:$0xff]
    %v110 = vld [vmem:[%s0 + $0x290] sm:$0xff]
    %v111 = vld [vmem:[%s0 + $0x298] sm:$0xff]
    %v112 = vld [vmem:[%s0 + $0x2a0] sm:$0xff]
    %v113 = vld [vmem:[%s0 + $0x2a8] sm:$0xff]
    %v114 = vld [vmem:[%s0 + $0x2b0] sm:$0xff]
    %v115 = vld [vmem:[%s0 + $0x2b8] sm:$0xff]
    %v116 = vld [vmem:[%s0 + $0x2c0] sm:$0xff]
    %v117 = vld [vmem:[%s0 + $0x2c8] sm:$0xff]
    %v118 = vld [vmem:[%s0 + $0x2d0] sm:$0xff]
    %v119 = vld [vmem:[%s0 + $0x2d8] sm:$0xff]
    %v120 = vld [vmem:[%s0 + $0x2e0] sm:$0xff]
    %v121 = vld [vmem:[%s0 + $0x2e8] sm:$0xff]
    %v122 = vld [vmem:[%s0 + $0x2f0] sm:$0xff]
    %v123 = vld [vmem:[%s0 + $0x2f8] sm:$0xff]
    %v124 = vld [vmem:[%s0 + $0x300] sm:$0xff]
    %v125 = vld [vmem:[%s0 + $0x308] sm:$0xff]
    %v126 = vld [vmem:[%s0 + $0x310] sm:$0xff]
    %v127 = vld [vmem:[%s0 + $0x318] sm:$0xff]
    %v128 = vld [vmem:[%s0 + $0x320] sm:$0xff]
    %v129 = vld [vmem:[%s0 + $0x328] sm:$0xff]
    %v130 = vld [vmem:[%s0 + $0x330] sm:$0xff]
    %v131 = vld [vmem:[%s0 + $0x338] sm:$0xff]
    %v132 = vld [vmem:[%s0 + $0x340] sm:$0xff]
    %v133 = vld [vmem:[%s0 + $0x348] sm:$0xff]
    %v134 = vld [vmem:[%s0 + $0x350] sm:$0xff]
    %v135 = vld [vmem:[%s0 + $0x358] sm:$0xff]
    %v136 = vld [vmem:[%s0 + $0x360] sm:$0xff]
    %v137 = vld [vmem:[%s0 + $0x368] sm:$0xff]
    %v138 = vld [vmem:[%s0 + $0x370] sm:$0xff]
    %v139 = vld [vmem:[%s0 + $0x378] sm:$0xff]
    %v140 = vld [vmem:[%s0 + $0x380] sm:$0xff]
    %v141 = vld [vmem:[%s0 + $0x388] sm:$0xff]
    %v142 = vld [vmem:[%s0 + $0x390] sm:$0xff]
    %v143 = vld [vmem:[%s0 + $0x398] sm:$0xff]
    %v144 = vld [vmem:[%s0 + $0x3a0] sm:$0xff]
    %v145 = vld [vmem:[%s0 + $0x3a8] sm:$0xff]
    %v146 = vld [vmem:[%s0 + $0x3b0] sm:$0xff]
    %v147 = vld [vmem:[%s0 + $0x3b8] sm:$0xff]
    %v148 = vld [vmem:[%s0 + $0x3c0] sm:$0xff]
    %v149 = vld [vmem:[%s0 + $0x3c8] sm:$0xff]
    %v150 = vld [vmem:[%s0 + $0x3d0] sm:$0xff]
    %v151 = vld [vmem:[%s0 + $0x3d8] sm:$0xff]
    %v152 = vld [vmem:[%s0 + $0x3e0] sm:$0xff]
    %v153 = vld [vmem:[%s0 + $0x3e8] sm:$0xff]
    %v154 = vld [vmem:[%s0 + $0x3f0] sm:$0xff]
    %v155 = vld [vmem:[%s0 + $0x3f8] sm:$0xff]
    %v156 = vld [vmem:[%s1] sm:$0xff]
    %v157 = vlaneseq
    %v158 = vshrl.u32 %v157, 7
    %v159 = vsub.s32 0, %v158
    %v160 = vrot.slane %v156, %v159
    %162 = vbcast.lane.b32.xlu0 %v160, 256
    %v163 = vpop.permute.xlu0 %162
    %s165 = sor.u32 256, 8
    %166 = vbcast.lane.b32.xlu0 %v160, %s165
    %v167 = vpop.permute.xlu0 %166
    %s169 = sor.u32 256, 16
    %170 = vbcast.lane.b32.xlu0 %v160, %s169
    %v171 = vpop.permute.xlu0 %170
    %s173 = sor.u32 256, 24
    %174 = vbcast.lane.b32.xlu0 %v160, %s173
    %v175 = vpop.permute.xlu0 %174
    %s177 = sor.u32 256, 32
    %178 = vbcast.lane.b32.xlu0 %v160, %s177
    %v179 = vpop.permute.xlu0 %178
    %s181 = sor.u32 256, 40
    %182 = vbcast.lane.b32.xlu0 %v160, %s181
    %v183 = vpop.permute.xlu0 %182
    %s185 = sor.u32 256, 48
    %186 = vbcast.lane.b32.xlu0 %v160, %s185
    %v187 = vpop.permute.xlu0 %186
    %s189 = sor.u32 256, 56
    %190 = vbcast.lane.b32.xlu0 %v160, %s189
    %v191 = vpop.permute.xlu0 %190
    %s193 = sor.u32 256, 64
    %194 = vbcast.lane.b32.xlu0 %v160, %s193
    %v195 = vpop.permute.xlu0 %194
    %s197 = sor.u32 256, 72
    %198 = vbcast.lane.b32.xlu0 %v160, %s197
    %v199 = vpop.permute.xlu0 %198
    %s201 = sor.u32 256, 80
    %202 = vbcast.lane.b32.xlu0 %v160, %s201
    %v203 = vpop.permute.xlu0 %202
    %s205 = sor.u32 256, 88
    %206 = vbcast.lane.b32.xlu0 %v160, %s205
    %v207 = vpop.permute.xlu0 %206
    %s209 = sor.u32 256, 96
    %210 = vbcast.lane.b32.xlu0 %v160, %s209
    %v211 = vpop.permute.xlu0 %210
    %s213 = sor.u32 256, 104
    %214 = vbcast.lane.b32.xlu0 %v160, %s213
    %v215 = vpop.permute.xlu0 %214
    %s217 = sor.u32 256, 112
    %218 = vbcast.lane.b32.xlu0 %v160, %s217
    %v219 = vpop.permute.xlu0 %218
    %s221 = sor.u32 256, 120
    %222 = vbcast.lane.b32.xlu0 %v160, %s221
    %v223 = vpop.permute.xlu0 %222
    %v224 = vlaneseq
    %v225 = vshrl.u32 %v224, 7
    %v226 = vsub.s32 1, %v225
    %v227 = vrot.slane %v156, %v226
    %229 = vbcast.lane.b32.xlu0 %v227, 256
    %v230 = vpop.permute.xlu0 %229
    %s232 = sor.u32 256, 8
    %233 = vbcast.lane.b32.xlu0 %v227, %s232
    %v234 = vpop.permute.xlu0 %233
    %s236 = sor.u32 256, 16
    %237 = vbcast.lane.b32.xlu0 %v227, %s236
    %v238 = vpop.permute.xlu0 %237
    %s240 = sor.u32 256, 24
    %241 = vbcast.lane.b32.xlu0 %v227, %s240
    %v242 = vpop.permute.xlu0 %241
    %s244 = sor.u32 256, 32
    %245 = vbcast.lane.b32.xlu0 %v227, %s244
    %v246 = vpop.permute.xlu0 %245
    %s248 = sor.u32 256, 40
    %249 = vbcast.lane.b32.xlu0 %v227, %s248
    %v250 = vpop.permute.xlu0 %249
    %s252 = sor.u32 256, 48
    %253 = vbcast.lane.b32.xlu0 %v227, %s252
    %v254 = vpop.permute.xlu0 %253
    %s256 = sor.u32 256, 56
    %257 = vbcast.lane.b32.xlu0 %v227, %s256
    %v258 = vpop.permute.xlu0 %257
    %s260 = sor.u32 256, 64
    %261 = vbcast.lane.b32.xlu0 %v227, %s260
    %v262 = vpop.permute.xlu0 %261
    %s264 = sor.u32 256, 72
    %265 = vbcast.lane.b32.xlu0 %v227, %s264
    %v266 = vpop.permute.xlu0 %265
    %s268 = sor.u32 256, 80
    %269 = vbcast.lane.b32.xlu0 %v227, %s268
    %v270 = vpop.permute.xlu0 %269
    %s272 = sor.u32 256, 88
    %273 = vbcast.lane.b32.xlu0 %v227, %s272
    %v274 = vpop.permute.xlu0 %273
    %s276 = sor.u32 256, 96
    %277 = vbcast.lane.b32.xlu0 %v227, %s276
    %v278 = vpop.permute.xlu0 %277
    %s280 = sor.u32 256, 104
    %281 = vbcast.lane.b32.xlu0 %v227, %s280
    %v282 = vpop.permute.xlu0 %281
    %s284 = sor.u32 256, 112
    %285 = vbcast.lane.b32.xlu0 %v227, %s284
    %v286 = vpop.permute.xlu0 %285
    %s288 = sor.u32 256, 120
    %289 = vbcast.lane.b32.xlu0 %v227, %s288
    %v290 = vpop.permute.xlu0 %289
    %v291 = vlaneseq
    %v292 = vshrl.u32 %v291, 7
    %v293 = vsub.s32 2, %v292
    %v294 = vrot.slane %v156, %v293
    %296 = vbcast.lane.b32.xlu0 %v294, 256
    %v297 = vpop.permute.xlu0 %296
    %s299 = sor.u32 256, 8
    %300 = vbcast.lane.b32.xlu0 %v294, %s299
    %v301 = vpop.permute.xlu0 %300
    %s303 = sor.u32 256, 16
    %304 = vbcast.lane.b32.xlu0 %v294, %s303
    %v305 = vpop.permute.xlu0 %304
    %s307 = sor.u32 256, 24
    %308 = vbcast.lane.b32.xlu0 %v294, %s307
    %v309 = vpop.permute.xlu0 %308
    %s311 = sor.u32 256, 32
    %312 = vbcast.lane.b32.xlu0 %v294, %s311
    %v313 = vpop.permute.xlu0 %312
    %s315 = sor.u32 256, 40
    %316 = vbcast.lane.b32.xlu0 %v294, %s315
    %v317 = vpop.permute.xlu0 %316
    %s319 = sor.u32 256, 48
    %320 = vbcast.lane.b32.xlu0 %v294, %s319
    %v321 = vpop.permute.xlu0 %320
    %s323 = sor.u32 256, 56
    %324 = vbcast.lane.b32.xlu0 %v294, %s323
    %v325 = vpop.permute.xlu0 %324
    %s327 = sor.u32 256, 64
    %328 = vbcast.lane.b32.xlu0 %v294, %s327
    %v329 = vpop.permute.xlu0 %328
    %s331 = sor.u32 256, 72
    %332 = vbcast.lane.b32.xlu0 %v294, %s331
    %v333 = vpop.permute.xlu0 %332
    %s335 = sor.u32 256, 80
    %336 = vbcast.lane.b32.xlu0 %v294, %s335
    %v337 = vpop.permute.xlu0 %336
    %s339 = sor.u32 256, 88
    %340 = vbcast.lane.b32.xlu0 %v294, %s339
    %v341 = vpop.permute.xlu0 %340
    %s343 = sor.u32 256, 96
    %344 = vbcast.lane.b32.xlu0 %v294, %s343
    %v345 = vpop.permute.xlu0 %344
    %s347 = sor.u32 256, 104
    %348 = vbcast.lane.b32.xlu0 %v294, %s347
    %v349 = vpop.permute.xlu0 %348
    %s351 = sor.u32 256, 112
    %352 = vbcast.lane.b32.xlu0 %v294, %s351
    %v353 = vpop.permute.xlu0 %352
    %s355 = sor.u32 256, 120
    %356 = vbcast.lane.b32.xlu0 %v294, %s355
    %v357 = vpop.permute.xlu0 %356
    %v358 = vlaneseq
    %v359 = vshrl.u32 %v358, 7
    %v360 = vsub.s32 3, %v359
    %v361 = vrot.slane %v156, %v360
    %363 = vbcast.lane.b32.xlu0 %v361, 256
    %v364 = vpop.permute.xlu0 %363
    %s366 = sor.u32 256, 8
    %367 = vbcast.lane.b32.xlu0 %v361, %s366
    %v368 = vpop.permute.xlu0 %367
    %s370 = sor.u32 256, 16
    %371 = vbcast.lane.b32.xlu0 %v361, %s370
    %v372 = vpop.permute.xlu0 %371
    %s374 = sor.u32 256, 24
    %375 = vbcast.lane.b32.xlu0 %v361, %s374
    %v376 = vpop.permute.xlu0 %375
    %s378 = sor.u32 256, 32
    %379 = vbcast.lane.b32.xlu0 %v361, %s378
    %v380 = vpop.permute.xlu0 %379
    %s382 = sor.u32 256, 40
    %383 = vbcast.lane.b32.xlu0 %v361, %s382
    %v384 = vpop.permute.xlu0 %383
    %s386 = sor.u32 256, 48
    %387 = vbcast.lane.b32.xlu0 %v361, %s386
    %v388 = vpop.permute.xlu0 %387
    %s390 = sor.u32 256, 56
    %391 = vbcast.lane.b32.xlu0 %v361, %s390
    %v392 = vpop.permute.xlu0 %391
    %s394 = sor.u32 256, 64
    %395 = vbcast.lane.b32.xlu0 %v361, %s394
    %v396 = vpop.permute.xlu0 %395
    %s398 = sor.u32 256, 72
    %399 = vbcast.lane.b32.xlu0 %v361, %s398
    %v400 = vpop.permute.xlu0 %399
    %s402 = sor.u32 256, 80
    %403 = vbcast.lane.b32.xlu0 %v361, %s402
    %v404 = vpop.permute.xlu0 %403
    %s406 = sor.u32 256, 88
    %407 = vbcast.lane.b32.xlu0 %v361, %s406
    %v408 = vpop.permute.xlu0 %407
    %s410 = sor.u32 256, 96
    %411 = vbcast.lane.b32.xlu0 %v361, %s410
    %v412 = vpop.permute.xlu0 %411
    %s414 = sor.u32 256, 104
    %415 = vbcast.lane.b32.xlu0 %v361, %s414
    %v416 = vpop.permute.xlu0 %415
    %s418 = sor.u32 256, 112
    %419 = vbcast.lane.b32.xlu0 %v361, %s418
    %v420 = vpop.permute.xlu0 %419
    %s422 = sor.u32 256, 120
    %423 = vbcast.lane.b32.xlu0 %v361, %s422
    %v424 = vpop.permute.xlu0 %423
    %v425 = vlaneseq
    %v426 = vshrl.u32 %v425, 7
    %v427 = vsub.s32 4, %v426
    %v428 = vrot.slane %v156, %v427
    %430 = vbcast.lane.b32.xlu0 %v428, 256
    %v431 = vpop.permute.xlu0 %430
    %s433 = sor.u32 256, 8
    %434 = vbcast.lane.b32.xlu0 %v428, %s433
    %v435 = vpop.permute.xlu0 %434
    %s437 = sor.u32 256, 16
    %438 = vbcast.lane.b32.xlu0 %v428, %s437
    %v439 = vpop.permute.xlu0 %438
    %s441 = sor.u32 256, 24
    %442 = vbcast.lane.b32.xlu0 %v428, %s441
    %v443 = vpop.permute.xlu0 %442
    %s445 = sor.u32 256, 32
    %446 = vbcast.lane.b32.xlu0 %v428, %s445
    %v447 = vpop.permute.xlu0 %446
    %s449 = sor.u32 256, 40
    %450 = vbcast.lane.b32.xlu0 %v428, %s449
    %v451 = vpop.permute.xlu0 %450
    %s453 = sor.u32 256, 48
    %454 = vbcast.lane.b32.xlu0 %v428, %s453
    %v455 = vpop.permute.xlu0 %454
    %s457 = sor.u32 256, 56
    %458 = vbcast.lane.b32.xlu0 %v428, %s457
    %v459 = vpop.permute.xlu0 %458
    %s461 = sor.u32 256, 64
    %462 = vbcast.lane.b32.xlu0 %v428, %s461
    %v463 = vpop.permute.xlu0 %462
    %s465 = sor.u32 256, 72
    %466 = vbcast.lane.b32.xlu0 %v428, %s465
    %v467 = vpop.permute.xlu0 %466
    %s469 = sor.u32 256, 80
    %470 = vbcast.lane.b32.xlu0 %v428, %s469
    %v471 = vpop.permute.xlu0 %470
    %s473 = sor.u32 256, 88
    %474 = vbcast.lane.b32.xlu0 %v428, %s473
    %v475 = vpop.permute.xlu0 %474
    %s477 = sor.u32 256, 96
    %478 = vbcast.lane.b32.xlu0 %v428, %s477
    %v479 = vpop.permute.xlu0 %478
    %s481 = sor.u32 256, 104
    %482 = vbcast.lane.b32.xlu0 %v428, %s481
    %v483 = vpop.permute.xlu0 %482
    %s485 = sor.u32 256, 112
    %486 = vbcast.lane.b32.xlu0 %v428, %s485
    %v487 = vpop.permute.xlu0 %486
    %s489 = sor.u32 256, 120
    %490 = vbcast.lane.b32.xlu0 %v428, %s489
    %v491 = vpop.permute.xlu0 %490
    %v492 = vlaneseq
    %v493 = vshrl.u32 %v492, 7
    %v494 = vsub.s32 5, %v493
    %v495 = vrot.slane %v156, %v494
    %497 = vbcast.lane.b32.xlu0 %v495, 256
    %v498 = vpop.permute.xlu0 %497
    %s500 = sor.u32 256, 8
    %501 = vbcast.lane.b32.xlu0 %v495, %s500
    %v502 = vpop.permute.xlu0 %501
    %s504 = sor.u32 256, 16
    %505 = vbcast.lane.b32.xlu0 %v495, %s504
    %v506 = vpop.permute.xlu0 %505
    %s508 = sor.u32 256, 24
    %509 = vbcast.lane.b32.xlu0 %v495, %s508
    %v510 = vpop.permute.xlu0 %509
    %s512 = sor.u32 256, 32
    %513 = vbcast.lane.b32.xlu0 %v495, %s512
    %v514 = vpop.permute.xlu0 %513
    %s516 = sor.u32 256, 40
    %517 = vbcast.lane.b32.xlu0 %v495, %s516
    %v518 = vpop.permute.xlu0 %517
    %s520 = sor.u32 256, 48
    %521 = vbcast.lane.b32.xlu0 %v495, %s520
    %v522 = vpop.permute.xlu0 %521
    %s524 = sor.u32 256, 56
    %525 = vbcast.lane.b32.xlu0 %v495, %s524
    %v526 = vpop.permute.xlu0 %525
    %s528 = sor.u32 256, 64
    %529 = vbcast.lane.b32.xlu0 %v495, %s528
    %v530 = vpop.permute.xlu0 %529
    %s532 = sor.u32 256, 72
    %533 = vbcast.lane.b32.xlu0 %v495, %s532
    %v534 = vpop.permute.xlu0 %533
    %s536 = sor.u32 256, 80
    %537 = vbcast.lane.b32.xlu0 %v495, %s536
    %v538 = vpop.permute.xlu0 %537
    %s540 = sor.u32 256, 88
    %541 = vbcast.lane.b32.xlu0 %v495, %s540
    %v542 = vpop.permute.xlu0 %541
    %s544 = sor.u32 256, 96
    %545 = vbcast.lane.b32.xlu0 %v495, %s544
    %v546 = vpop.permute.xlu0 %545
    %s548 = sor.u32 256, 104
    %549 = vbcast.lane.b32.xlu0 %v495, %s548
    %v550 = vpop.permute.xlu0 %549
    %s552 = sor.u32 256, 112
    %553 = vbcast.lane.b32.xlu0 %v495, %s552
    %v554 = vpop.permute.xlu0 %553
    %s556 = sor.u32 256, 120
    %557 = vbcast.lane.b32.xlu0 %v495, %s556
    %v558 = vpop.permute.xlu0 %557
    %v559 = vlaneseq
    %v560 = vshrl.u32 %v559, 7
    %v561 = vsub.s32 6, %v560
    %v562 = vrot.slane %v156, %v561
    %564 = vbcast.lane.b32.xlu0 %v562, 256
    %v565 = vpop.permute.xlu0 %564
    %s567 = sor.u32 256, 8
    %568 = vbcast.lane.b32.xlu0 %v562, %s567
    %v569 = vpop.permute.xlu0 %568
    %s571 = sor.u32 256, 16
    %572 = vbcast.lane.b32.xlu0 %v562, %s571
    %v573 = vpop.permute.xlu0 %572
    %s575 = sor.u32 256, 24
    %576 = vbcast.lane.b32.xlu0 %v562, %s575
    %v577 = vpop.permute.xlu0 %576
    %s579 = sor.u32 256, 32
    %580 = vbcast.lane.b32.xlu0 %v562, %s579
    %v581 = vpop.permute.xlu0 %580
    %s583 = sor.u32 256, 40
    %584 = vbcast.lane.b32.xlu0 %v562, %s583
    %v585 = vpop.permute.xlu0 %584
    %s587 = sor.u32 256, 48
    %588 = vbcast.lane.b32.xlu0 %v562, %s587
    %v589 = vpop.permute.xlu0 %588
    %s591 = sor.u32 256, 56
    %592 = vbcast.lane.b32.xlu0 %v562, %s591
    %v593 = vpop.permute.xlu0 %592
    %s595 = sor.u32 256, 64
    %596 = vbcast.lane.b32.xlu0 %v562, %s595
    %v597 = vpop.permute.xlu0 %596
    %s599 = sor.u32 256, 72
    %600 = vbcast.lane.b32.xlu0 %v562, %s599
    %v601 = vpop.permute.xlu0 %600
    %s603 = sor.u32 256, 80
    %604 = vbcast.lane.b32.xlu0 %v562, %s603
    %v605 = vpop.permute.xlu0 %604
    %s607 = sor.u32 256, 88
    %608 = vbcast.lane.b32.xlu0 %v562, %s607
    %v609 = vpop.permute.xlu0 %608
    %s611 = sor.u32 256, 96
    %612 = vbcast.lane.b32.xlu0 %v562, %s611
    %v613 = vpop.permute.xlu0 %612
    %s615 = sor.u32 256, 104
    %616 = vbcast.lane.b32.xlu0 %v562, %s615
    %v617 = vpop.permute.xlu0 %616
    %s619 = sor.u32 256, 112
    %620 = vbcast.lane.b32.xlu0 %v562, %s619
    %v621 = vpop.permute.xlu0 %620
    %s623 = sor.u32 256, 120
    %624 = vbcast.lane.b32.xlu0 %v562, %s623
    %v625 = vpop.permute.xlu0 %624
    %v626 = vlaneseq
    %v627 = vshrl.u32 %v626, 7
    %v628 = vsub.s32 7, %v627
    %v629 = vrot.slane %v156, %v628
    %631 = vbcast.lane.b32.xlu0 %v629, 256
    %v632 = vpop.permute.xlu0 %631
    %s634 = sor.u32 256, 8
    %635 = vbcast.lane.b32.xlu0 %v629, %s634
    %v636 = vpop.permute.xlu0 %635
    %s638 = sor.u32 256, 16
    %639 = vbcast.lane.b32.xlu0 %v629, %s638
    %v640 = vpop.permute.xlu0 %639
    %s642 = sor.u32 256, 24
    %643 = vbcast.lane.b32.xlu0 %v629, %s642
    %v644 = vpop.permute.xlu0 %643
    %s646 = sor.u32 256, 32
    %647 = vbcast.lane.b32.xlu0 %v629, %s646
    %v648 = vpop.permute.xlu0 %647
    %s650 = sor.u32 256, 40
    %651 = vbcast.lane.b32.xlu0 %v629, %s650
    %v652 = vpop.permute.xlu0 %651
    %s654 = sor.u32 256, 48
    %655 = vbcast.lane.b32.xlu0 %v629, %s654
    %v656 = vpop.permute.xlu0 %655
    %s658 = sor.u32 256, 56
    %659 = vbcast.lane.b32.xlu0 %v629, %s658
    %v660 = vpop.permute.xlu0 %659
    %s662 = sor.u32 256, 64
    %663 = vbcast.lane.b32.xlu0 %v629, %s662
    %v664 = vpop.permute.xlu0 %663
    %s666 = sor.u32 256, 72
    %667 = vbcast.lane.b32.xlu0 %v629, %s666
    %v668 = vpop.permute.xlu0 %667
    %s670 = sor.u32 256, 80
    %671 = vbcast.lane.b32.xlu0 %v629, %s670
    %v672 = vpop.permute.xlu0 %671
    %s674 = sor.u32 256, 88
    %675 = vbcast.lane.b32.xlu0 %v629, %s674
    %v676 = vpop.permute.xlu0 %675
    %s678 = sor.u32 256, 96
    %679 = vbcast.lane.b32.xlu0 %v629, %s678
    %v680 = vpop.permute.xlu0 %679
    %s682 = sor.u32 256, 104
    %683 = vbcast.lane.b32.xlu0 %v629, %s682
    %v684 = vpop.permute.xlu0 %683
    %s686 = sor.u32 256, 112
    %687 = vbcast.lane.b32.xlu0 %v629, %s686
    %v688 = vpop.permute.xlu0 %687
    %s690 = sor.u32 256, 120
    %691 = vbcast.lane.b32.xlu0 %v629, %s690
    %v692 = vpop.permute.xlu0 %691
    %v693 = vmul.f32 %v28, %v163
    %v694 = vmul.f32 %v29, %v167
    %v695 = vmul.f32 %v30, %v171
    %v696 = vmul.f32 %v31, %v175
    %v697 = vmul.f32 %v32, %v179
    %v698 = vmul.f32 %v33, %v183
    %v699 = vmul.f32 %v34, %v187
    %v700 = vmul.f32 %v35, %v191
    %v701 = vmul.f32 %v36, %v195
    %v702 = vmul.f32 %v37, %v199
    %v703 = vmul.f32 %v38, %v203
    %v704 = vmul.f32 %v39, %v207
    %v705 = vmul.f32 %v40, %v211
    %v706 = vmul.f32 %v41, %v215
    %v707 = vmul.f32 %v42, %v219
    %v708 = vmul.f32 %v43, %v223
    %v709 = vmul.f32 %v44, %v230
    %v710 = vmul.f32 %v45, %v234
    %v711 = vmul.f32 %v46, %v238
    %v712 = vmul.f32 %v47, %v242
    %v713 = vmul.f32 %v48, %v246
    %v714 = vmul.f32 %v49, %v250
    %v715 = vmul.f32 %v50, %v254
    %v716 = vmul.f32 %v51, %v258
    %v717 = vmul.f32 %v52, %v262
    %v718 = vmul.f32 %v53, %v266
    %v719 = vmul.f32 %v54, %v270
    %v720 = vmul.f32 %v55, %v274
    %v721 = vmul.f32 %v56, %v278
    %v722 = vmul.f32 %v57, %v282
    %v723 = vmul.f32 %v58, %v286
    %v724 = vmul.f32 %v59, %v290
    %v725 = vmul.f32 %v60, %v297
    %v726 = vmul.f32 %v61, %v301
    %v727 = vmul.f32 %v62, %v305
    %v728 = vmul.f32 %v63, %v309
    %v729 = vmul.f32 %v64, %v313
    %v730 = vmul.f32 %v65, %v317
    %v731 = vmul.f32 %v66, %v321
    %v732 = vmul.f32 %v67, %v325
    %v733 = vmul.f32 %v68, %v329
    %v734 = vmul.f32 %v69, %v333
    %v735 = vmul.f32 %v70, %v337
    %v736 = vmul.f32 %v71, %v341
    %v737 = vmul.f32 %v72, %v345
    %v738 = vmul.f32 %v73, %v349
    %v739 = vmul.f32 %v74, %v353
    %v740 = vmul.f32 %v75, %v357
    %v741 = vmul.f32 %v76, %v364
    %v742 = vmul.f32 %v77, %v368
    %v743 = vmul.f32 %v78, %v372
    %v744 = vmul.f32 %v79, %v376
    %v745 = vmul.f32 %v80, %v380
    %v746 = vmul.f32 %v81, %v384
    %v747 = vmul.f32 %v82, %v388
    %v748 = vmul.f32 %v83, %v392
    %v749 = vmul.f32 %v84, %v396
    %v750 = vmul.f32 %v85, %v400
    %v751 = vmul.f32 %v86, %v404
    %v752 = vmul.f32 %v87, %v408
    %v753 = vmul.f32 %v88, %v412
    %v754 = vmul.f32 %v89, %v416
    %v755 = vmul.f32 %v90, %v420
    %v756 = vmul.f32 %v91, %v424
    %v757 = vmul.f32 %v92, %v431
    %v758 = vmul.f32 %v93, %v435
    %v759 = vmul.f32 %v94, %v439
    %v760 = vmul.f32 %v95, %v443
    %v761 = vmul.f32 %v96, %v447
    %v762 = vmul.f32 %v97, %v451
    %v763 = vmul.f32 %v98, %v455
    %v764 = vmul.f32 %v99, %v459
    %v765 = vmul.f32 %v100, %v463
    %v766 = vmul.f32 %v101, %v467
    %v767 = vmul.f32 %v102, %v471
    %v768 = vmul.f32 %v103, %v475
    %v769 = vmul.f32 %v104, %v479
    %v770 = vmul.f32 %v105, %v483
    %v771 = vmul.f32 %v106, %v487
    %v772 = vmul.f32 %v107, %v491
    %v773 = vmul.f32 %v108, %v498
    %v774 = vmul.f32 %v109, %v502
    %v775 = vmul.f32 %v110, %v506
    %v776 = vmul.f32 %v111, %v510
    %v777 = vmul.f32 %v112, %v514
    %v778 = vmul.f32 %v113, %v518
    %v779 = vmul.f32 %v114, %v522
    %v780 = vmul.f32 %v115, %v526
    %v781 = vmul.f32 %v116, %v530
    %v782 = vmul.f32 %v117, %v534
    %v783 = vmul.f32 %v118, %v538
    %v784 = vmul.f32 %v119, %v542
    %v785 = vmul.f32 %v120, %v546
    %v786 = vmul.f32 %v121, %v550
    %v787 = vmul.f32 %v122, %v554
    %v788 = vmul.f32 %v123, %v558
    %v789 = vmul.f32 %v124, %v565
    %v790 = vmul.f32 %v125, %v569
    %v791 = vmul.f32 %v126, %v573
    %v792 = vmul.f32 %v127, %v577
    %v793 = vmul.f32 %v128, %v581
    %v794 = vmul.f32 %v129, %v585
    %v795 = vmul.f32 %v130, %v589
    %v796 = vmul.f32 %v131, %v593
    %v797 = vmul.f32 %v132, %v597
    %v798 = vmul.f32 %v133, %v601
    %v799 = vmul.f32 %v134, %v605
    %v800 = vmul.f32 %v135, %v609
    %v801 = vmul.f32 %v136, %v613
    %v802 = vmul.f32 %v137, %v617
    %v803 = vmul.f32 %v138, %v621
    %v804 = vmul.f32 %v139, %v625
    %v805 = vmul.f32 %v140, %v632
    %v806 = vmul.f32 %v141, %v636
    %v807 = vmul.f32 %v142, %v640
    %v808 = vmul.f32 %v143, %v644
    %v809 = vmul.f32 %v144, %v648
    %v810 = vmul.f32 %v145, %v652
    %v811 = vmul.f32 %v146, %v656
    %v812 = vmul.f32 %v147, %v660
    %v813 = vmul.f32 %v148, %v664
    %v814 = vmul.f32 %v149, %v668
    %v815 = vmul.f32 %v150, %v672
    %v816 = vmul.f32 %v151, %v676
    %v817 = vmul.f32 %v152, %v680
    %v818 = vmul.f32 %v153, %v684
    %v819 = vmul.f32 %v154, %v688
    %v820 = vmul.f32 %v155, %v692
    %v821 = vld [vmem:[#allocation2] sm:$0xff]
    %vm822 = vcmask 261120
    %v823 = vsel %vm822, %v693, 0.0
    %v824 = vsel %vm822, %v694, 0.0
    %v825 = vadd.f32 %v823, %v824
    %v826 = vsel %vm822, %v695, 0.0
    %v827 = vadd.f32 %v825, %v826
    %v828 = vsel %vm822, %v696, 0.0
    %v829 = vadd.f32 %v827, %v828
    %v830 = vsel %vm822, %v697, 0.0
    %v831 = vadd.f32 %v829, %v830
    %v832 = vsel %vm822, %v698, 0.0
    %v833 = vadd.f32 %v831, %v832
    %v834 = vsel %vm822, %v699, 0.0
    %v835 = vadd.f32 %v833, %v834
    %v836 = vsel %vm822, %v700, 0.0
    %v837 = vadd.f32 %v835, %v836
    %v838 = vsel %vm822, %v701, 0.0
    %v839 = vadd.f32 %v837, %v838
    %v840 = vsel %vm822, %v702, 0.0
    %v841 = vadd.f32 %v839, %v840
    %v842 = vsel %vm822, %v703, 0.0
    %v843 = vadd.f32 %v841, %v842
    %v844 = vsel %vm822, %v704, 0.0
    %v845 = vadd.f32 %v843, %v844
    %v846 = vsel %vm822, %v705, 0.0
    %v847 = vadd.f32 %v845, %v846
    %v848 = vsel %vm822, %v706, 0.0
    %v849 = vadd.f32 %v847, %v848
    %v850 = vsel %vm822, %v707, 0.0
    %v851 = vadd.f32 %v849, %v850
    %v852 = vsel %vm822, %v708, 0.0
    %v853 = vadd.f32 %v851, %v852
    %v854 = vrot.slane %v853, 4
    %v855 = vadd.f32 %v853, %v854
    %v856 = vrot.slane %v855, 2
    %v857 = vadd.f32 %v855, %v856
    %v858 = vrot.slane %v857, 1
    %v859 = vadd.f32 %v857, %v858
    %v860 = vsel %vm822, %v709, 0.0
    %v861 = vsel %vm822, %v710, 0.0
    %v862 = vadd.f32 %v860, %v861
    %v863 = vsel %vm822, %v711, 0.0
    %v864 = vadd.f32 %v862, %v863
    %v865 = vsel %vm822, %v712, 0.0
    %v866 = vadd.f32 %v864, %v865
    %v867 = vsel %vm822, %v713, 0.0
    %v868 = vadd.f32 %v866, %v867
    %v869 = vsel %vm822, %v714, 0.0
    %v870 = vadd.f32 %v868, %v869
    %v871 = vsel %vm822, %v715, 0.0
    %v872 = vadd.f32 %v870, %v871
    %v873 = vsel %vm822, %v716, 0.0
    %v874 = vadd.f32 %v872, %v873
    %v875 = vsel %vm822, %v717, 0.0
    %v876 = vadd.f32 %v874, %v875
    %v877 = vsel %vm822, %v718, 0.0
    %v878 = vadd.f32 %v876, %v877
    %v879 = vsel %vm822, %v719, 0.0
    %v880 = vadd.f32 %v878, %v879
    %v881 = vsel %vm822, %v720, 0.0
    %v882 = vadd.f32 %v880, %v881
    %v883 = vsel %vm822, %v721, 0.0
    %v884 = vadd.f32 %v882, %v883
    %v885 = vsel %vm822, %v722, 0.0
    %v886 = vadd.f32 %v884, %v885
    %v887 = vsel %vm822, %v723, 0.0
    %v888 = vadd.f32 %v886, %v887
    %v889 = vsel %vm822, %v724, 0.0
    %v890 = vadd.f32 %v888, %v889
    %v891 = vrot.slane %v890, 4
    %v892 = vadd.f32 %v890, %v891
    %v893 = vrot.slane %v892, 2
    %v894 = vadd.f32 %v892, %v893
    %v895 = vrot.slane %v894, 1
    %v896 = vadd.f32 %v894, %v895
    %v897 = vsel %vm822, %v725, 0.0
    %v898 = vsel %vm822, %v726, 0.0
    %v899 = vadd.f32 %v897, %v898
    %v900 = vsel %vm822, %v727, 0.0
    %v901 = vadd.f32 %v899, %v900
    %v902 = vsel %vm822, %v728, 0.0
    %v903 = vadd.f32 %v901, %v902
    %v904 = vsel %vm822, %v729, 0.0
    %v905 = vadd.f32 %v903, %v904
    %v906 = vsel %vm822, %v730, 0.0
    %v907 = vadd.f32 %v905, %v906
    %v908 = vsel %vm822, %v731, 0.0
    %v909 = vadd.f32 %v907, %v908
    %v910 = vsel %vm822, %v732, 0.0
    %v911 = vadd.f32 %v909, %v910
    %v912 = vsel %vm822, %v733, 0.0
    %v913 = vadd.f32 %v911, %v912
    %v914 = vsel %vm822, %v734, 0.0
    %v915 = vadd.f32 %v913, %v914
    %v916 = vsel %vm822, %v735, 0.0
    %v917 = vadd.f32 %v915, %v916
    %v918 = vsel %vm822, %v736, 0.0
    %v919 = vadd.f32 %v917, %v918
    %v920 = vsel %vm822, %v737, 0.0
    %v921 = vadd.f32 %v919, %v920
    %v922 = vsel %vm822, %v738, 0.0
    %v923 = vadd.f32 %v921, %v922
    %v924 = vsel %vm822, %v739, 0.0
    %v925 = vadd.f32 %v923, %v924
    %v926 = vsel %vm822, %v740, 0.0
    %v927 = vadd.f32 %v925, %v926
    %v928 = vrot.slane %v927, 4
    %v929 = vadd.f32 %v927, %v928
    %v930 = vrot.slane %v929, 2
    %v931 = vadd.f32 %v929, %v930
    %v932 = vrot.slane %v931, 1
    %v933 = vadd.f32 %v931, %v932
    %v934 = vsel %vm822, %v741, 0.0
    %v935 = vsel %vm822, %v742, 0.0
    %v936 = vadd.f32 %v934, %v935
    %v937 = vsel %vm822, %v743, 0.0
    %v938 = vadd.f32 %v936, %v937
    %v939 = vsel %vm822, %v744, 0.0
    %v940 = vadd.f32 %v938, %v939
    %v941 = vsel %vm822, %v745, 0.0
    %v942 = vadd.f32 %v940, %v941
    %v943 = vsel %vm822, %v746, 0.0
    %v944 = vadd.f32 %v942, %v943
    %v945 = vsel %vm822, %v747, 0.0
    %v946 = vadd.f32 %v944, %v945
    %v947 = vsel %vm822, %v748, 0.0
    %v948 = vadd.f32 %v946, %v947
    %v949 = vsel %vm822, %v749, 0.0
    %v950 = vadd.f32 %v948, %v949
    %v951 = vsel %vm822, %v750, 0.0
    %v952 = vadd.f32 %v950, %v951
    %v953 = vsel %vm822, %v751, 0.0
    %v954 = vadd.f32 %v952, %v953
    %v955 = vsel %vm822, %v752, 0.0
    %v956 = vadd.f32 %v954, %v955
    %v957 = vsel %vm822, %v753, 0.0
    %v958 = vadd.f32 %v956, %v957
    %v959 = vsel %vm822, %v754, 0.0
    %v960 = vadd.f32 %v958, %v959
    %v961 = vsel %vm822, %v755, 0.0
    %v962 = vadd.f32 %v960, %v961
    %v963 = vsel %vm822, %v756, 0.0
    %v964 = vadd.f32 %v962, %v963
    %v965 = vrot.slane %v964, 4
    %v966 = vadd.f32 %v964, %v965
    %v967 = vrot.slane %v966, 2
    %v968 = vadd.f32 %v966, %v967
    %v969 = vrot.slane %v968, 1
    %v970 = vadd.f32 %v968, %v969
    %v971 = vsel %vm822, %v757, 0.0
    %v972 = vsel %vm822, %v758, 0.0
    %v973 = vadd.f32 %v971, %v972
    %v974 = vsel %vm822, %v759, 0.0
    %v975 = vadd.f32 %v973, %v974
    %v976 = vsel %vm822, %v760, 0.0
    %v977 = vadd.f32 %v975, %v976
    %v978 = vsel %vm822, %v761, 0.0
    %v979 = vadd.f32 %v977, %v978
    %v980 = vsel %vm822, %v762, 0.0
    %v981 = vadd.f32 %v979, %v980
    %v982 = vsel %vm822, %v763, 0.0
    %v983 = vadd.f32 %v981, %v982
    %v984 = vsel %vm822, %v764, 0.0
    %v985 = vadd.f32 %v983, %v984
    %v986 = vsel %vm822, %v765, 0.0
    %v987 = vadd.f32 %v985, %v986
    %v988 = vsel %vm822, %v766, 0.0
    %v989 = vadd.f32 %v987, %v988
    %v990 = vsel %vm822, %v767, 0.0
    %v991 = vadd.f32 %v989, %v990
    %v992 = vsel %vm822, %v768, 0.0
    %v993 = vadd.f32 %v991, %v992
    %v994 = vsel %vm822, %v769, 0.0
    %v995 = vadd.f32 %v993, %v994
    %v996 = vsel %vm822, %v770, 0.0
    %v997 = vadd.f32 %v995, %v996
    %v998 = vsel %vm822, %v771, 0.0
    %v999 = vadd.f32 %v997, %v998
    %v1000 = vsel %vm822, %v772, 0.0
    %v1001 = vadd.f32 %v999, %v1000
    %v1002 = vrot.slane %v1001, 4
    %v1003 = vadd.f32 %v1001, %v1002
    %v1004 = vrot.slane %v1003, 2
    %v1005 = vadd.f32 %v1003, %v1004
    %v1006 = vrot.slane %v1005, 1
    %v1007 = vadd.f32 %v1005, %v1006
    %v1008 = vsel %vm822, %v773, 0.0
    %v1009 = vsel %vm822, %v774, 0.0
    %v1010 = vadd.f32 %v1008, %v1009
    %v1011 = vsel %vm822, %v775, 0.0
    %v1012 = vadd.f32 %v1010, %v1011
    %v1013 = vsel %vm822, %v776, 0.0
    %v1014 = vadd.f32 %v1012, %v1013
    %v1015 = vsel %vm822, %v777, 0.0
    %v1016 = vadd.f32 %v1014, %v1015
    %v1017 = vsel %vm822, %v778, 0.0
    %v1018 = vadd.f32 %v1016, %v1017
    %v1019 = vsel %vm822, %v779, 0.0
    %v1020 = vadd.f32 %v1018, %v1019
    %v1021 = vsel %vm822, %v780, 0.0
    %v1022 = vadd.f32 %v1020, %v1021
    %v1023 = vsel %vm822, %v781, 0.0
    %v1024 = vadd.f32 %v1022, %v1023
    %v1025 = vsel %vm822, %v782, 0.0
    %v1026 = vadd.f32 %v1024, %v1025
    %v1027 = vsel %vm822, %v783, 0.0
    %v1028 = vadd.f32 %v1026, %v1027
    %v1029 = vsel %vm822, %v784, 0.0
    %v1030 = vadd.f32 %v1028, %v1029
    %v1031 = vsel %vm822, %v785, 0.0
    %v1032 = vadd.f32 %v1030, %v1031
    %v1033 = vsel %vm822, %v786, 0.0
    %v1034 = vadd.f32 %v1032, %v1033
    %v1035 = vsel %vm822, %v787, 0.0
    %v1036 = vadd.f32 %v1034, %v1035
    %v1037 = vsel %vm822, %v788, 0.0
    %v1038 = vadd.f32 %v1036, %v1037
    %v1039 = vrot.slane %v1038, 4
    %v1040 = vadd.f32 %v1038, %v1039
    %v1041 = vrot.slane %v1040, 2
    %v1042 = vadd.f32 %v1040, %v1041
    %v1043 = vrot.slane %v1042, 1
    %v1044 = vadd.f32 %v1042, %v1043
    %v1045 = vsel %vm822, %v789, 0.0
    %v1046 = vsel %vm822, %v790, 0.0
    %v1047 = vadd.f32 %v1045, %v1046
    %v1048 = vsel %vm822, %v791, 0.0
    %v1049 = vadd.f32 %v1047, %v1048
    %v1050 = vsel %vm822, %v792, 0.0
    %v1051 = vadd.f32 %v1049, %v1050
    %v1052 = vsel %vm822, %v793, 0.0
    %v1053 = vadd.f32 %v1051, %v1052
    %v1054 = vsel %vm822, %v794, 0.0
    %v1055 = vadd.f32 %v1053, %v1054
    %v1056 = vsel %vm822, %v795, 0.0
    %v1057 = vadd.f32 %v1055, %v1056
    %v1058 = vsel %vm822, %v796, 0.0
    %v1059 = vadd.f32 %v1057, %v1058
    %v1060 = vsel %vm822, %v797, 0.0
    %v1061 = vadd.f32 %v1059, %v1060
    %v1062 = vsel %vm822, %v798, 0.0
    %v1063 = vadd.f32 %v1061, %v1062
    %v1064 = vsel %vm822, %v799, 0.0
    %v1065 = vadd.f32 %v1063, %v1064
    %v1066 = vsel %vm822, %v800, 0.0
    %v1067 = vadd.f32 %v1065, %v1066
    %v1068 = vsel %vm822, %v801, 0.0
    %v1069 = vadd.f32 %v1067, %v1068
    %v1070 = vsel %vm822, %v802, 0.0
    %v1071 = vadd.f32 %v1069, %v1070
    %v1072 = vsel %vm822, %v803, 0.0
    %v1073 = vadd.f32 %v1071, %v1072
    %v1074 = vsel %vm822, %v804, 0.0
    %v1075 = vadd.f32 %v1073, %v1074
    %v1076 = vrot.slane %v1075, 4
    %v1077 = vadd.f32 %v1075, %v1076
    %v1078 = vrot.slane %v1077, 2
    %v1079 = vadd.f32 %v1077, %v1078
    %v1080 = vrot.slane %v1079, 1
    %v1081 = vadd.f32 %v1079, %v1080
    %v1082 = vsel %vm822, %v805, 0.0
    %v1083 = vsel %vm822, %v806, 0.0
    %v1084 = vadd.f32 %v1082, %v1083
    %v1085 = vsel %vm822, %v807, 0.0
    %v1086 = vadd.f32 %v1084, %v1085
    %v1087 = vsel %vm822, %v808, 0.0
    %v1088 = vadd.f32 %v1086, %v1087
    %v1089 = vsel %vm822, %v809, 0.0
    %v1090 = vadd.f32 %v1088, %v1089
    %v1091 = vsel %vm822, %v810, 0.0
    %v1092 = vadd.f32 %v1090, %v1091
    %v1093 = vsel %vm822, %v811, 0.0
    %v1094 = vadd.f32 %v1092, %v1093
    %v1095 = vsel %vm822, %v812, 0.0
    %v1096 = vadd.f32 %v1094, %v1095
    %v1097 = vsel %vm822, %v813, 0.0
    %v1098 = vadd.f32 %v1096, %v1097
    %v1099 = vsel %vm822, %v814, 0.0
    %v1100 = vadd.f32 %v1098, %v1099
    %v1101 = vsel %vm822, %v815, 0.0
    %v1102 = vadd.f32 %v1100, %v1101
    %v1103 = vsel %vm822, %v816, 0.0
    %v1104 = vadd.f32 %v1102, %v1103
    %v1105 = vsel %vm822, %v817, 0.0
    %v1106 = vadd.f32 %v1104, %v1105
    %v1107 = vsel %vm822, %v818, 0.0
    %v1108 = vadd.f32 %v1106, %v1107
    %v1109 = vsel %vm822, %v819, 0.0
    %v1110 = vadd.f32 %v1108, %v1109
    %v1111 = vsel %vm822, %v820, 0.0
    %v1112 = vadd.f32 %v1110, %v1111
    %v1113 = vrot.slane %v1112, 4
    %v1114 = vadd.f32 %v1112, %v1113
    %v1115 = vrot.slane %v1114, 2
    %v1116 = vadd.f32 %v1114, %v1115
    %v1117 = vrot.slane %v1116, 1
    %v1118 = vadd.f32 %v1116, %v1117
    %vm1127 = vcmask 1041409
    %v1128 = vsel %vm1127, %v896, %v859
    %vm1129 = vcmask 1042434
    %v1130 = vsel %vm1129, %v933, %v1128
    %vm1131 = vcmask 1043459
    %v1132 = vsel %vm1131, %v970, %v1130
    %vm1133 = vcmask 1044484
    %v1134 = vsel %vm1133, %v1007, %v1132
    %vm1135 = vcmask 1045509
    %v1136 = vsel %vm1135, %v1044, %v1134
    %vm1137 = vcmask 1046534
    %v1138 = vsel %vm1137, %v1081, %v1136
    %vm1139 = vcmask 1047559
    %v1140 = vsel %vm1139, %v1118, %v1138
    %v1142 = vadd.f32 %v821, %v1140
    %1143 = vst.msk [vmem:[#allocation2] sm:$0xff] %vm822, %v1142
    %v1144 = vld [vmem:[#allocation3] sm:$0xff]
    %1145 = vadd.xlane.f32.xlu0 %v156
    %v1146 = vpop.xlane.xlu0 %1145
    %v1147 = vadd.f32 %v1144, %v1146
    %vm1148 = vcmask 7168
    %1149 = vst.msk [vmem:[#allocation3] sm:$0xff] %vm1148, %v1147
    // Predicated region
    $region22: #{tpu_custom_call.1} parent=1 // pred_check
      %p1150 = pneg %p20
    $region23: #{tpu_custom_call.1} parent=1 // pred_check_branch
      %1152 = sbr.rel (%p1150) target = $region25
    $region24: #{tpu_custom_call.1} parent=1 // pred_region
      %v1153 = vld [vmem:[#allocation2] sm:$0xff]
      %v1154 = vld [vmem:[#allocation3] sm:$0xff]
      %1156 = vset.pattern.permute.xlu0 0
      %1157 = vperm.xlu0 %1156, %v1154
      %v1158 = vpop.permute.xlu0 %1157
      %v1160 = vrcp.pop %v1158
      %v1161 = vmul.f32 %v1153, %v1160
      %v1162 = vld [vmem:[%s2] sm:$0xff]
      %v1163 = vld [vmem:[%s2 + $0x8] sm:$0xff]
      %v1164 = vld [vmem:[%s2 + $0x10] sm:$0xff]
      %v1165 = vld [vmem:[%s2 + $0x18] sm:$0xff]
      %v1166 = vld [vmem:[%s3] sm:$0x1]
      %v1168 = vlaneseq
      %v1169 = vshrl.u32 %v1168, 7
      %v1170 = vsub.s32 0, %v1169
      %v1171 = vrot.slane %v1166, %v1170
      %v1174 = vsel %vm822, %v1161, 0
      %1176 = vmatprep.subr.mxu0 0.0
      %1177 = vmatpush1.msra.mxu0 %v1162
      %1178 = vmatprep.subr.mxu0 0.0
      %1179 = vmatpush1.msra.mxu0 %v1163
      %1180 = vmatprep.subr.mxu0 0.0
      %1181 = vmatpush1.msra.mxu0 %v1164
      %1182 = vmatprep.subr.mxu0 0.0
      %1183 = vmatpush1.msra.mxu0 %v1165
      %1184 = vmatprep.subr.mxu0 0.0
      %1185 = vmatpush1.msra.mxu0 0.0
      %1186 = vmatprep.subr.mxu0 0.0
      %1187 = vmatpush1.msra.mxu0 0.0
      %1188 = vmatprep.subr.mxu0 0.0
      %1189 = vmatpush1.msra.mxu0 0.0
      %1190 = vmatprep.subr.mxu0 0.0
      %1191 = vmatpush1.msra.mxu0 0.0
      %1192 = vmatprep.subr.mxu0 0.0
      %1193 = vmatpush1.msra.mxu0 0.0
      %1194 = vmatprep.subr.mxu0 0.0
      %1195 = vmatpush1.msra.mxu0 0.0
      %1196 = vmatprep.subr.mxu0 0.0
      %1197 = vmatpush1.msra.mxu0 0.0
      %1198 = vmatprep.subr.mxu0 0.0
      %1199 = vmatpush1.msra.mxu0 0.0
      %1200 = vmatprep.subr.mxu0 0.0
      %1201 = vmatpush1.msra.mxu0 0.0
      %1202 = vmatprep.subr.mxu0 0.0
      %1203 = vmatpush1.msra.mxu0 0.0
      %1204 = vmatprep.subr.mxu0 0.0
      %1205 = vmatpush1.msra.mxu0 0.0
      %1206 = vmatprep.subr.mxu0 0.0
      %1207 = vmatpush1.msra.mxu0 0.0
      %1208 = vmatprep.subr.mxu0 0.0
      %1209 = vmatpush1.msra.mxu0 0.0
      %1210 = vmatprep.subr.mxu0 0.0
      %1211 = vmatpush1.msra.mxu0 0.0
      %1212 = vmatprep.subr.mxu0 0.0
      %1213 = vmatpush1.msra.mxu0 0.0
      %1214 = vmatprep.subr.mxu0 0.0
      %1215 = vmatpush1.msra.mxu0 0.0
      %1216 = vmatprep.subr.mxu0 0.0
      %1217 = vmatpush1.msra.mxu0 0.0
      %1218 = vmatprep.subr.mxu0 0.0
      %1219 = vmatpush1.msra.mxu0 0.0
      %1220 = vmatprep.subr.mxu0 0.0
      %1221 = vmatpush1.msra.mxu0 0.0
      %1222 = vmatprep.subr.mxu0 0.0
      %1223 = vmatpush1.msra.mxu0 0.0
      %1224 = vmatprep.subr.mxu0 0.0
      %1225 = vmatpush1.msra.mxu0 0.0
      %1226 = vmatprep.subr.mxu0 0.0
      %1227 = vmatpush1.msra.mxu0 0.0
      %1228 = vmatprep.subr.mxu0 0.0
      %1229 = vmatpush1.msra.mxu0 0.0
      %1230 = vmatprep.subr.mxu0 0.0
      %1231 = vmatpush1.msra.mxu0 0.0
      %1232 = vmatprep.subr.mxu0 0.0
      %1233 = vmatpush1.msra.mxu0 0.0
      %1234 = vmatprep.subr.mxu0 0.0
      %1235 = vmatpush1.msra.mxu0 0.0
      %1236 = vmatprep.subr.mxu0 0.0
      %1237 = vmatpush1.msra.mxu0 0.0
      %1238 = vmatprep.subr.mxu0 0.0
      %1239 = vmatpush1.msra.mxu0 0.0
      %1240 = vmatprep.mubr.f32.mxu0 0.0
      %1241 = vmatmul.mubr.f32.gmra.mrb[0].mxu0 %v1174
      %v1242 = vpop.f32.mrb[0].mxu0
      %v1243 = vadd.f32 %v1171, %v1242
      %v1244 = vpop.f32.mrb[0].mxu0
      %1245 = vdwg.mxu0
      %v1246 = vmax.f32 %v1243, 0.0
      %1247 = vst.msk [vmem:[#allocation4] sm:$0xff] %vm822, %v1243
      %v1249 = vcombine.high %v1246, %v1246
      %v1251 = vunpack.c.l.s4 1966171168
      %v1252 = vunpack.c.0.s8 %v1251
      %v1253 = vlaneseq
      %v1254 = vshrl.u32 %v1253, 7
      %v1255 = vsub.s32 %v1252, %v1254
      %v1256 = vrot.slane %v1246, %v1255
      %v1258 = vunpack.c.l.s4 1966171168
      %v1259 = vunpack.c.0.s8 %v1258
      %v1260 = vlaneseq
      %v1261 = vshrl.u32 %v1260, 7
      %v1262 = vsub.s32 %v1259, %v1261
      %v1263 = vrot.slane %v1249, %v1262
      %v1264 = vcombine.high %v1256, %v1256
      %v1265 = vcombine.high %v1263, %v1263
      %v1267 = vunpack.c.l.s4 1966171168
      %v1268 = vunpack.c.0.s8 %v1267
      %v1269 = vlaneseq
      %v1270 = vshrl.u32 %v1269, 7
      %v1271 = vsub.s32 %v1268, %v1270
      %v1272 = vrot.slane %v1256, %v1271
      %v1274 = vunpack.c.l.s4 1966171168
      %v1275 = vunpack.c.0.s8 %v1274
      %v1276 = vlaneseq
      %v1277 = vshrl.u32 %v1276, 7
      %v1278 = vsub.s32 %v1275, %v1277
      %v1279 = vrot.slane %v1263, %v1278
      %v1281 = vunpack.c.l.s4 1966171168
      %v1282 = vunpack.c.0.s8 %v1281
      %v1283 = vlaneseq
      %v1284 = vshrl.u32 %v1283, 7
      %v1285 = vsub.s32 %v1282, %v1284
      %v1286 = vrot.slane %v1264, %v1285
      %v1288 = vunpack.c.l.s4 1966171168
      %v1289 = vunpack.c.0.s8 %v1288
      %v1290 = vlaneseq
      %v1291 = vshrl.u32 %v1290, 7
      %v1292 = vsub.s32 %v1289, %v1291
      %v1293 = vrot.slane %v1265, %v1292
      %v1294 = vcombine.high %v1272, %v1272
      %v1295 = vcombine.high %v1279, %v1279
      %v1296 = vcombine.high %v1286, %v1286
      %v1297 = vcombine.high %v1293, %v1293
      %v1298 = vlaneseq
      %v1299 = vshrl.u32 %v1298, 7
      %v1300 = vsub.s32 0, %v1299
      %v1301 = vrot.slane %v1272, %v1300
      %v1302 = vlaneseq
      %v1303 = vshrl.u32 %v1302, 7
      %v1304 = vsub.s32 0, %v1303
      %v1305 = vrot.slane %v1286, %v1304
      %v1306 = vlaneseq
      %v1307 = vshrl.u32 %v1306, 7
      %v1308 = vsub.s32 0, %v1307
      %v1309 = vrot.slane %v1294, %v1308
      %v1310 = vlaneseq
      %v1311 = vshrl.u32 %v1310, 7
      %v1312 = vsub.s32 0, %v1311
      %v1313 = vrot.slane %v1296, %v1312
      %v1314 = vlaneseq
      %v1315 = vshrl.u32 %v1314, 7
      %v1316 = vsub.s32 0, %v1315
      %v1317 = vrot.slane %v1279, %v1316
      %v1318 = vlaneseq
      %v1319 = vshrl.u32 %v1318, 7
      %v1320 = vsub.s32 0, %v1319
      %v1321 = vrot.slane %v1293, %v1320
      %v1322 = vlaneseq
      %v1323 = vshrl.u32 %v1322, 7
      %v1324 = vsub.s32 0, %v1323
      %v1325 = vrot.slane %v1295, %v1324
      %v1326 = vlaneseq
      %v1327 = vshrl.u32 %v1326, 7
      %v1328 = vsub.s32 0, %v1327
      %v1329 = vrot.slane %v1297, %v1328
      %vm1338 = vcmask 254976
      %1339 = vst.msk [vmem:[%s5] sm:$0x3] %vm1338, %v1301
      %1340 = vst.msk [vmem:[%s5 + $0x4] sm:$0x3] %vm1338, %v1305
      %1341 = vst.msk [vmem:[%s5 + $0x8] sm:$0x3] %vm1338, %v1309
      %1342 = vst.msk [vmem:[%s5 + $0xc] sm:$0x3] %vm1338, %v1313
      %1343 = vst.msk [vmem:[%s5 + $0x10] sm:$0x3] %vm1338, %v1317
      %1344 = vst.msk [vmem:[%s5 + $0x14] sm:$0x3] %vm1338, %v1321
      %1345 = vst.msk [vmem:[%s5 + $0x18] sm:$0x3] %vm1338, %v1325
      %1346 = vst.msk [vmem:[%s5 + $0x1c] sm:$0x3] %vm1338, %v1329
      %v1348 = vcombine.high %v1243, %v1243
      %v1350 = vunpack.c.l.s4 1966171168
      %v1351 = vunpack.c.0.s8 %v1350
      %v1352 = vlaneseq
      %v1353 = vshrl.u32 %v1352, 7
      %v1354 = vsub.s32 %v1351, %v1353
      %v1355 = vrot.slane %v1243, %v1354
      %v1357 = vunpack.c.l.s4 1966171168
      %v1358 = vunpack.c.0.s8 %v1357
      %v1359 = vlaneseq
      %v1360 = vshrl.u32 %v1359, 7
      %v1361 = vsub.s32 %v1358, %v1360
      %v1362 = vrot.slane %v1348, %v1361
      %v1363 = vcombine.high %v1355, %v1355
      %v1364 = vcombine.high %v1362, %v1362
      %v1366 = vunpack.c.l.s4 1966171168
      %v1367 = vunpack.c.0.s8 %v1366
      %v1368 = vlaneseq
      %v1369 = vshrl.u32 %v1368, 7
      %v1370 = vsub.s32 %v1367, %v1369
      %v1371 = vrot.slane %v1355, %v1370
      %v1373 = vunpack.c.l.s4 1966171168
      %v1374 = vunpack.c.0.s8 %v1373
      %v1375 = vlaneseq
      %v1376 = vshrl.u32 %v1375, 7
      %v1377 = vsub.s32 %v1374, %v1376
      %v1378 = vrot.slane %v1362, %v1377
      %v1380 = vunpack.c.l.s4 1966171168
      %v1381 = vunpack.c.0.s8 %v1380
      %v1382 = vlaneseq
      %v1383 = vshrl.u32 %v1382, 7
      %v1384 = vsub.s32 %v1381, %v1383
      %v1385 = vrot.slane %v1363, %v1384
      %v1387 = vunpack.c.l.s4 1966171168
      %v1388 = vunpack.c.0.s8 %v1387
      %v1389 = vlaneseq
      %v1390 = vshrl.u32 %v1389, 7
      %v1391 = vsub.s32 %v1388, %v1390
      %v1392 = vrot.slane %v1364, %v1391
      %v1393 = vcombine.high %v1371, %v1371
      %v1394 = vcombine.high %v1378, %v1378
      %v1395 = vcombine.high %v1385, %v1385
      %v1396 = vcombine.high %v1392, %v1392
      %vm1405 = vcmask 253952
      %1406 = vst.msk [vmem:[%s5 + $0x2] sm:$0x1] %vm1405, %v1371
      %1407 = vst.msk [vmem:[%s5 + $0x6] sm:$0x1] %vm1405, %v1385
      %1408 = vst.msk [vmem:[%s5 + $0xa] sm:$0x1] %vm1405, %v1393
      %1409 = vst.msk [vmem:[%s5 + $0xe] sm:$0x1] %vm1405, %v1395
      %1410 = vst.msk [vmem:[%s5 + $0x12] sm:$0x1] %vm1405, %v1378
      %1411 = vst.msk [vmem:[%s5 + $0x16] sm:$0x1] %vm1405, %v1392
      %1412 = vst.msk [vmem:[%s5 + $0x1a] sm:$0x1] %vm1405, %v1394
      %1413 = vst.msk [vmem:[%s5 + $0x1e] sm:$0x1] %vm1405, %v1396
    $region25: #{tpu_custom_call.1} parent=1 // pred_fallthru
      _
    // Predicated region
    $region26: #{tpu_custom_call.1} parent=1 // pred_check
      _
    $region27: #{tpu_custom_call.1} parent=1 // pred_check_branch
      %1415 = sbr.rel (0) target = $region29
    $region28: #{tpu_custom_call.1} parent=1 // pred_region
      %s1417 = ssub.s32 128, 128
      %1418 = vsyncadd [#allocation5], %s1417
      %s1420 = sshll.u32 [#allocation4], 4
      %s1421 = int_to_ptr.vmem [resolvable:$true] %s1420
      %1423 = dma.vmem_to_hbm [thread:$0]  %s1421, 128, %s4, [#allocation5]
    $region29: #{tpu_custom_call.1} parent=1 // pred_fallthru
      _
    // Predicated region
    $region30: #{tpu_custom_call.1} parent=1 // pred_check
      _
    $region31: #{tpu_custom_call.1} parent=1 // pred_check_branch
      %1425 = sbr.rel (0) target = $region33
    $region32: #{tpu_custom_call.1} parent=1 // pred_region
      _
    $region33: #{tpu_custom_call.1} parent=1 // pred_fallthru
      _
    // Predicated region
    $region34: #{tpu_custom_call.1} parent=1 // pred_check
      _
    $region35: #{tpu_custom_call.1} parent=1 // pred_check_branch
      %1427 = sbr.rel (0) target = $region37
    $region36: #{tpu_custom_call.1} parent=1 // pred_region
      %1428 = dma.done [#allocation5], 128
    $region37: #{tpu_custom_call.1} parent=1 // pred_fallthru
      _
    // Predicated region
    $region38: #{tpu_custom_call.1} parent=1 // pred_check
      _
    $region39: #{tpu_custom_call.1} parent=1 // pred_check_branch
      %1430 = sbr.rel (0) target = $region41
    $region40: #{tpu_custom_call.1} parent=1 // pred_region
      _
    $region41: #{tpu_custom_call.1} parent=1 // pred_fallthru
      _
    %1431 = vsyncpa [#allocation5], 1

</llo_original>
